<compile_context>
chip_gen: v6e
topology: v6e:2x2x1
jax: 0.10.0
libtpu: 0.0.40
codegen_flags: <defaults>
</compile_context>

<pallas_src>
import functools

import numpy as np
import jax
import jax.numpy as jnp
from jax import lax
from jax.experimental import pallas as pl
from jax.experimental.pallas import tpu as pltpu


def basic_block_kernel(x_ref, w1_ref, w2_ref, b1_ref, b2_ref, mask_ref, o_ref,
                       *, W, negative_slope):
    # x_ref:   (Cin, H*W)  one image, NCHW flattened (channels on sublanes, pixels on lanes)
    # w*_ref:  (9, Cout, C) BN-scale-folded conv taps, tap index t = dh*3 + dw
    # b*_ref:  (Cout, 1)    folded BN shifts (eval mode)
    # mask_ref:(9, H*W)     per-tap validity mask (0.0 / 1.0) for SAME padding
    # o_ref:   (Cout, H*W)
    Cin, HW = x_ref.shape
    Cout = o_ref.shape[0]

    def lrelu(v):
        return jnp.where(v >= 0, v, negative_slope * v)

    def shift_lanes(v, s):
        # result[:, p] = v[:, p + s]; lanes that wrap around are zeroed by the tap mask.
        if s == 0:
            return v
        k = s % HW
        # TODO(synk): pltpu.roll would keep these shifts on the XLU instead of copy slots.
        return jnp.concatenate([v[:, k:], v[:, :k]], axis=1)

    def conv3x3(v, w_ref):
        # v: (C, HW) f32.  3x3 SAME conv = 9 shifted taps; channel mixing is done
        # as broadcast FMAs on the VPU (C << 128, so the MXU would run ~1-3% utilized).
        C = v.shape[0]
        acc = jnp.zeros((Cout, HW), jnp.float32)
        for dh in range(3):
            for dw in range(3):
                t = dh * 3 + dw
                vs = shift_lanes(v, (dh - 1) * W + (dw - 1)) * mask_ref[pl.ds(t, 1), :]
                w_t = w_ref[t]                                    # (Cout, C), f32
                for ci in range(C):
                    acc = acc + w_t[:, ci:ci + 1] * vs[ci:ci + 1, :]
        return acc

    x = x_ref[...].astype(jnp.float32)
    y = lrelu(conv3x3(x, w1_ref) + b1_ref[...])                   # conv1 -> bn1 -> LReLU
    y2 = conv3x3(y, w2_ref) + b2_ref[...]                         # conv2 -> bn2
    out = lrelu(y2 + x_ref[...].astype(jnp.float32))              # + identity -> LReLU
    o_ref[...] = out.astype(o_ref.dtype)


def basic_block_forward(x_nchw, w1_oihw, w2_oihw, bn1, bn2, *,
                        eps=1e-5, negative_slope=0.2, compute_dtype=jnp.float32):
    """x_nchw: (B, Cin, H, W).  w*_oihw: (Cout, Cin, 3, 3) PyTorch conv weights.
    bn* = (gamma, beta, running_mean, running_var), each (Cout,).  Returns (B, Cout, H, W)."""
    B, Cin, H, W = x_nchw.shape
    Cout = w1_oihw.shape[0]
    assert w1_oihw.shape == (Cout, Cin, 3, 3) and w2_oihw.shape == (Cout, Cout, 3, 3)
    # Identity residual path of BasicBlock: stride=1, downsample=None.
    assert Cin == Cout, "identity residual requires inplanes == planes (no downsample)"
    HW = H * W

    g1, be1, mu1, var1 = bn1
    g2, be2, mu2, var2 = bn2
    s1 = g1 / jnp.sqrt(var1 + eps)
    s2 = g2 / jnp.sqrt(var2 + eps)

    # Fold BN scale into the conv weights (trace time); only the shift stays in-kernel.
    w1_taps = jnp.transpose(w1_oihw * s1[:, None, None, None],
                            (2, 3, 0, 1)).reshape(9, Cout, Cin).astype(jnp.float32)
    w2_taps = jnp.transpose(w2_oihw * s2[:, None, None, None],
                            (2, 3, 0, 1)).reshape(9, Cout, Cout).astype(jnp.float32)
    b1_col = (be1 - mu1 * s1).reshape(Cout, 1).astype(jnp.float32)
    b2_col = (be2 - mu2 * s2).reshape(Cout, 1).astype(jnp.float32)

    # Static per-tap SAME-padding validity masks over the flattened H*W lane axis.
    hh = np.arange(H)[:, None]
    ww = np.arange(W)[None, :]
    masks = np.stack([(((hh + dh - 1) >= 0) & ((hh + dh - 1) < H) &
                       ((ww + dw - 1) >= 0) & ((ww + dw - 1) < W)).reshape(-1)
                      for dh in range(3) for dw in range(3)]).astype(np.float32)
    masks = jnp.asarray(masks)                                     # (9, HW)

    # NCHW kept end-to-end: a free reshape to (B, C, H*W); lane dim = H*W (dense).
    x3 = x_nchw.reshape(B, Cin, HW).astype(compute_dtype)

    kernel = functools.partial(basic_block_kernel, W=W, negative_slope=negative_slope)

    out3 = pl.pallas_call(
        kernel,
        out_shape=jax.ShapeDtypeStruct((B, Cout, HW), x_nchw.dtype),
        grid_spec=pltpu.PrefetchScalarGridSpec(
            num_scalar_prefetch=0,
            grid=(B,),                       # one image per step; >= 2 parallel steps
            in_specs=[
                pl.BlockSpec((None, Cin, HW), lambda i: (i, 0, 0)),
                pl.BlockSpec((9, Cout, Cin), lambda i: (0, 0, 0)),
                pl.BlockSpec((9, Cout, Cout), lambda i: (0, 0, 0)),
                pl.BlockSpec((Cout, 1), lambda i: (0, 0)),
                pl.BlockSpec((Cout, 1), lambda i: (0, 0)),
                pl.BlockSpec((9, HW), lambda i: (0, 0)),
            ],
            out_specs=pl.BlockSpec((None, Cout, HW), lambda i: (i, 0, 0)),
        ),
        compiler_params=pltpu.CompilerParams(dimension_semantics=("parallel",)),
    )(x3, w1_taps, w2_taps, b1_col, b2_col, masks)

    return out3.reshape(B, Cout, H, W)


def ref_forward(x, w1, w2, bn1, bn2, eps=1e-5):
    """Pure-JAX reference (XLA conv, NCHW/OIHW) for validation."""
    g1, be1, mu1, var1 = bn1
    g2, be2, mu2, var2 = bn2
    dn = ('NCHW', 'OIHW', 'NCHW')

    def bn(v, g, be, mu, var):
        s = g / jnp.sqrt(var + eps)
        return v * s[None, :, None, None] + (be - mu * s)[None, :, None, None]

    y = lax.conv_general_dilated(x, w1, (1, 1), 'SAME', dimension_numbers=dn,
                                 precision=lax.Precision.HIGHEST)
    y = bn(y, g1, be1, mu1, var1)
    y = jnp.where(y >= 0, y, 0.2 * y)
    y2 = lax.conv_general_dilated(y, w2, (1, 1), 'SAME', dimension_numbers=dn,
                                  precision=lax.Precision.HIGHEST)
    y2 = bn(y2, g2, be2, mu2, var2)
    out = y2 + x
    return jnp.where(out >= 0, out, 0.2 * out)


if __name__ == "__main__":
    # BasicBlock(inplanes=4, planes=4, stride=1, downsample=None, leaky_relu=True)
    B, C, H, W = 2, 4, 16, 16

    key = jax.random.PRNGKey(0)
    ks = jax.random.split(key, 11)

    x = jax.random.normal(ks[0], (B, C, H, W), jnp.float32)

    # Conv weights in PyTorch OIHW layout (Cout, Cin, 3, 3), bias=False.
    w1 = 0.1 * jax.random.normal(ks[1], (C, C, 3, 3), jnp.float32)
    w2 = 0.1 * jax.random.normal(ks[2], (C, C, 3, 3), jnp.float32)

    # BatchNorm (eval mode) parameters.
    g1 = 1.0 + 0.1 * jax.random.normal(ks[3], (C,), jnp.float32)
    be1 = 0.1 * jax.random.normal(ks[4], (C,), jnp.float32)
    mu1 = 0.1 * jax.random.normal(ks[5], (C,), jnp.float32)
    var1 = jnp.abs(1.0 + 0.1 * jax.random.normal(ks[6], (C,), jnp.float32))
    g2 = 1.0 + 0.1 * jax.random.normal(ks[7], (C,), jnp.float32)
    be2 = 0.1 * jax.random.normal(ks[8], (C,), jnp.float32)
    mu2 = 0.1 * jax.random.normal(ks[9], (C,), jnp.float32)
    var2 = jnp.abs(1.0 + 0.1 * jax.random.normal(ks[10], (C,), jnp.float32))

    bn1 = (g1, be1, mu1, var1)
    bn2 = (g2, be2, mu2, var2)

    # f32 activations: tight check against the f32 XLA reference.
    out = jax.block_until_ready(basic_block_forward(x, w1, w2, bn1, bn2))
    ref = jax.block_until_ready(ref_forward(x, w1, w2, bn1, bn2))
    assert out.shape == (B, C, H, W)
    np.testing.assert_allclose(np.asarray(out), np.asarray(ref), rtol=2e-3, atol=2e-3)

    # bf16 activation traffic (in-kernel math stays f32): compare against a reference
    # fed the same bf16-quantized input so the check remains tight.
    out_bf16 = jax.block_until_ready(
        basic_block_forward(x, w1, w2, bn1, bn2, compute_dtype=jnp.bfloat16))
    x_q = x.astype(jnp.bfloat16).astype(jnp.float32)
    ref_bf16 = jax.block_until_ready(ref_forward(x_q, w1, w2, bn1, bn2))
    np.testing.assert_allclose(np.asarray(out_bf16), np.asarray(ref_bf16),
                               rtol=2e-3, atol=2e-3)

    print("KERNEL_OK")
</pallas_src>

<mosaic_0001>
module attributes {stable_mosaic.version = 11 : i64} {
  func.func @basic_block_kernel(%arg0: i32, %arg1: memref<1x4x256xf32, #tpu.memory_space<vmem>>, %arg2: memref<9x4x4xf32, #tpu.memory_space<vmem>>, %arg3: memref<9x4x4xf32, #tpu.memory_space<vmem>>, %arg4: memref<4x1xf32, #tpu.memory_space<vmem>>, %arg5: memref<4x1xf32, #tpu.memory_space<vmem>>, %arg6: memref<9x256xf32, #tpu.memory_space<vmem>>, %arg7: memref<1x4x256xf32, #tpu.memory_space<vmem>>) attributes {dimension_semantics = [#tpu.dimension_semantics<parallel>], iteration_bounds = array<i64: 2>, scalar_prefetch = 0 : i64, scratch_operands = 0 : i64, tpu.core_type = #tpu.core_type<tc>, window_params = [{transform_indices = @transform_0, window_bounds = array<i64: 1, 4, 256>}, {pipeline_mode = #tpu.pipeline_mode<synchronous>, transform_indices = @transform_1, window_bounds = array<i64: 9, 4, 4>}, {pipeline_mode = #tpu.pipeline_mode<synchronous>, transform_indices = @transform_2, window_bounds = array<i64: 9, 4, 4>}, {pipeline_mode = #tpu.pipeline_mode<synchronous>, transform_indices = @transform_3, window_bounds = array<i64: 4, 1>}, {pipeline_mode = #tpu.pipeline_mode<synchronous>, transform_indices = @transform_4, window_bounds = array<i64: 4, 1>}, {pipeline_mode = #tpu.pipeline_mode<synchronous>, transform_indices = @transform_5, window_bounds = array<i64: 9, 256>}, {transform_indices = @transform_6, window_bounds = array<i64: 1, 4, 256>}]} {
    %c0 = arith.constant 0 : index
    %c0_0 = arith.constant 0 : index
    %c0_1 = arith.constant 0 : index
    %0 = vector.load %arg1[%c0, %c0_0, %c0_1] : memref<1x4x256xf32, #tpu.memory_space<vmem>>, vector<1x4x256xf32>
    %1 = vector.shape_cast %0 : vector<1x4x256xf32> to vector<4x256xf32>
    %cst = arith.constant 0.000000e+00 : f32
    %2 = vector.broadcast %cst : f32 to vector<4x256xf32>
    %3 = vector.extract_strided_slice %1 {offsets = [0, 239], sizes = [4, 17], strides = [1, 1]} : vector<4x256xf32> to vector<4x17xf32>
    %4 = vector.extract_strided_slice %1 {offsets = [0, 0], sizes = [4, 239], strides = [1, 1]} : vector<4x256xf32> to vector<4x239xf32>
    %5 = tpu.concatenate %3, %4 in 1 : vector<4x17xf32>, vector<4x239xf32> -> vector<4x256xf32>
    %c0_2 = arith.constant 0 : index
    %c0_3 = arith.constant 0 : index
    %6 = vector.load %arg6[%c0_2, %c0_3] : memref<9x256xf32, #tpu.memory_space<vmem>>, vector<1x256xf32>
    %7 = vector.broadcast %6 : vector<1x256xf32> to vector<4x256xf32>
    %8 = arith.mulf %5, %7 : vector<4x256xf32>
    %c0_4 = arith.constant 0 : index
    %c0_5 = arith.constant 0 : index
    %c0_6 = arith.constant 0 : index
    %9 = vector.load %arg2[%c0_4, %c0_5, %c0_6] : memref<9x4x4xf32, #tpu.memory_space<vmem>>, vector<1x4x4xf32>
    %10 = vector.shape_cast %9 : vector<1x4x4xf32> to vector<4x4xf32>
    %11 = vector.extract_strided_slice %10 {offsets = [0, 0], sizes = [4, 1], strides = [1, 1]} : vector<4x4xf32> to vector<4x1xf32>
    %12 = vector.extract_strided_slice %8 {offsets = [0, 0], sizes = [1, 256], strides = [1, 1]} : vector<4x256xf32> to vector<1x256xf32>
    %13 = vector.broadcast %11 : vector<4x1xf32> to vector<4x256xf32>
    %14 = vector.broadcast %12 : vector<1x256xf32> to vector<4x256xf32>
    %15 = arith.mulf %13, %14 : vector<4x256xf32>
    %16 = arith.addf %2, %15 : vector<4x256xf32>
    %17 = vector.extract_strided_slice %10 {offsets = [0, 1], sizes = [4, 1], strides = [1, 1]} : vector<4x4xf32> to vector<4x1xf32>
    %18 = vector.extract_strided_slice %8 {offsets = [1, 0], sizes = [1, 256], strides = [1, 1]} : vector<4x256xf32> to vector<1x256xf32>
    %19 = vector.broadcast %17 : vector<4x1xf32> to vector<4x256xf32>
    %20 = vector.broadcast %18 : vector<1x256xf32> to vector<4x256xf32>
    %21 = arith.mulf %19, %20 : vector<4x256xf32>
    %22 = arith.addf %16, %21 : vector<4x256xf32>
    %23 = vector.extract_strided_slice %10 {offsets = [0, 2], sizes = [4, 1], strides = [1, 1]} : vector<4x4xf32> to vector<4x1xf32>
    %24 = vector.extract_strided_slice %8 {offsets = [2, 0], sizes = [1, 256], strides = [1, 1]} : vector<4x256xf32> to vector<1x256xf32>
    %25 = vector.broadcast %23 : vector<4x1xf32> to vector<4x256xf32>
    %26 = vector.broadcast %24 : vector<1x256xf32> to vector<4x256xf32>
    %27 = arith.mulf %25, %26 : vector<4x256xf32>
    %28 = arith.addf %22, %27 : vector<4x256xf32>
    %29 = vector.extract_strided_slice %10 {offsets = [0, 3], sizes = [4, 1], strides = [1, 1]} : vector<4x4xf32> to vector<4x1xf32>
    %30 = vector.extract_strided_slice %8 {offsets = [3, 0], sizes = [1, 256], strides = [1, 1]} : vector<4x256xf32> to vector<1x256xf32>
    %31 = vector.broadcast %29 : vector<4x1xf32> to vector<4x256xf32>
    %32 = vector.broadcast %30 : vector<1x256xf32> to vector<4x256xf32>
    %33 = arith.mulf %31, %32 : vector<4x256xf32>
    %34 = arith.addf %28, %33 : vector<4x256xf32>
    %35 = vector.extract_strided_slice %1 {offsets = [0, 240], sizes = [4, 16], strides = [1, 1]} : vector<4x256xf32> to vector<4x16xf32>
    %36 = vector.extract_strided_slice %1 {offsets = [0, 0], sizes = [4, 240], strides = [1, 1]} : vector<4x256xf32> to vector<4x240xf32>
    %37 = tpu.concatenate %35, %36 in 1 : vector<4x16xf32>, vector<4x240xf32> -> vector<4x256xf32>
    %c1 = arith.constant 1 : index
    %c0_7 = arith.constant 0 : index
    %38 = vector.load %arg6[%c1, %c0_7] : memref<9x256xf32, #tpu.memory_space<vmem>>, vector<1x256xf32>
    %39 = vector.broadcast %38 : vector<1x256xf32> to vector<4x256xf32>
    %40 = arith.mulf %37, %39 : vector<4x256xf32>
    %c1_8 = arith.constant 1 : index
    %c0_9 = arith.constant 0 : index
    %c0_10 = arith.constant 0 : index
    %41 = vector.load %arg2[%c1_8, %c0_9, %c0_10] : memref<9x4x4xf32, #tpu.memory_space<vmem>>, vector<1x4x4xf32>
    %42 = vector.shape_cast %41 : vector<1x4x4xf32> to vector<4x4xf32>
    %43 = vector.extract_strided_slice %42 {offsets = [0, 0], sizes = [4, 1], strides = [1, 1]} : vector<4x4xf32> to vector<4x1xf32>
    %44 = vector.extract_strided_slice %40 {offsets = [0, 0], sizes = [1, 256], strides = [1, 1]} : vector<4x256xf32> to vector<1x256xf32>
    %45 = vector.broadcast %43 : vector<4x1xf32> to vector<4x256xf32>
    %46 = vector.broadcast %44 : vector<1x256xf32> to vector<4x256xf32>
    %47 = arith.mulf %45, %46 : vector<4x256xf32>
    %48 = arith.addf %34, %47 : vector<4x256xf32>
    %49 = vector.extract_strided_slice %42 {offsets = [0, 1], sizes = [4, 1], strides = [1, 1]} : vector<4x4xf32> to vector<4x1xf32>
    %50 = vector.extract_strided_slice %40 {offsets = [1, 0], sizes = [1, 256], strides = [1, 1]} : vector<4x256xf32> to vector<1x256xf32>
    %51 = vector.broadcast %49 : vector<4x1xf32> to vector<4x256xf32>
    %52 = vector.broadcast %50 : vector<1x256xf32> to vector<4x256xf32>
    %53 = arith.mulf %51, %52 : vector<4x256xf32>
    %54 = arith.addf %48, %53 : vector<4x256xf32>
    %55 = vector.extract_strided_slice %42 {offsets = [0, 2], sizes = [4, 1], strides = [1, 1]} : vector<4x4xf32> to vector<4x1xf32>
    %56 = vector.extract_strided_slice %40 {offsets = [2, 0], sizes = [1, 256], strides = [1, 1]} : vector<4x256xf32> to vector<1x256xf32>
    %57 = vector.broadcast %55 : vector<4x1xf32> to vector<4x256xf32>
    %58 = vector.broadcast %56 : vector<1x256xf32> to vector<4x256xf32>
    %59 = arith.mulf %57, %58 : vector<4x256xf32>
    %60 = arith.addf %54, %59 : vector<4x256xf32>
    %61 = vector.extract_strided_slice %42 {offsets = [0, 3], sizes = [4, 1], strides = [1, 1]} : vector<4x4xf32> to vector<4x1xf32>
    %62 = vector.extract_strided_slice %40 {offsets = [3, 0], sizes = [1, 256], strides = [1, 1]} : vector<4x256xf32> to vector<1x256xf32>
    %63 = vector.broadcast %61 : vector<4x1xf32> to vector<4x256xf32>
    %64 = vector.broadcast %62 : vector<1x256xf32> to vector<4x256xf32>
    %65 = arith.mulf %63, %64 : vector<4x256xf32>
    %66 = arith.addf %60, %65 : vector<4x256xf32>
    %67 = vector.extract_strided_slice %1 {offsets = [0, 241], sizes = [4, 15], strides = [1, 1]} : vector<4x256xf32> to vector<4x15xf32>
    %68 = vector.extract_strided_slice %1 {offsets = [0, 0], sizes = [4, 241], strides = [1, 1]} : vector<4x256xf32> to vector<4x241xf32>
    %69 = tpu.concatenate %67, %68 in 1 : vector<4x15xf32>, vector<4x241xf32> -> vector<4x256xf32>
    %c2 = arith.constant 2 : index
    %c0_11 = arith.constant 0 : index
    %70 = vector.load %arg6[%c2, %c0_11] : memref<9x256xf32, #tpu.memory_space<vmem>>, vector<1x256xf32>
    %71 = vector.broadcast %70 : vector<1x256xf32> to vector<4x256xf32>
    %72 = arith.mulf %69, %71 : vector<4x256xf32>
    %c2_12 = arith.constant 2 : index
    %c0_13 = arith.constant 0 : index
    %c0_14 = arith.constant 0 : index
    %73 = vector.load %arg2[%c2_12, %c0_13, %c0_14] : memref<9x4x4xf32, #tpu.memory_space<vmem>>, vector<1x4x4xf32>
    %74 = vector.shape_cast %73 : vector<1x4x4xf32> to vector<4x4xf32>
    %75 = vector.extract_strided_slice %74 {offsets = [0, 0], sizes = [4, 1], strides = [1, 1]} : vector<4x4xf32> to vector<4x1xf32>
    %76 = vector.extract_strided_slice %72 {offsets = [0, 0], sizes = [1, 256], strides = [1, 1]} : vector<4x256xf32> to vector<1x256xf32>
    %77 = vector.broadcast %75 : vector<4x1xf32> to vector<4x256xf32>
    %78 = vector.broadcast %76 : vector<1x256xf32> to vector<4x256xf32>
    %79 = arith.mulf %77, %78 : vector<4x256xf32>
    %80 = arith.addf %66, %79 : vector<4x256xf32>
    %81 = vector.extract_strided_slice %74 {offsets = [0, 1], sizes = [4, 1], strides = [1, 1]} : vector<4x4xf32> to vector<4x1xf32>
    %82 = vector.extract_strided_slice %72 {offsets = [1, 0], sizes = [1, 256], strides = [1, 1]} : vector<4x256xf32> to vector<1x256xf32>
    %83 = vector.broadcast %81 : vector<4x1xf32> to vector<4x256xf32>
    %84 = vector.broadcast %82 : vector<1x256xf32> to vector<4x256xf32>
    %85 = arith.mulf %83, %84 : vector<4x256xf32>
    %86 = arith.addf %80, %85 : vector<4x256xf32>
    %87 = vector.extract_strided_slice %74 {offsets = [0, 2], sizes = [4, 1], strides = [1, 1]} : vector<4x4xf32> to vector<4x1xf32>
    %88 = vector.extract_strided_slice %72 {offsets = [2, 0], sizes = [1, 256], strides = [1, 1]} : vector<4x256xf32> to vector<1x256xf32>
    %89 = vector.broadcast %87 : vector<4x1xf32> to vector<4x256xf32>
    %90 = vector.broadcast %88 : vector<1x256xf32> to vector<4x256xf32>
    %91 = arith.mulf %89, %90 : vector<4x256xf32>
    %92 = arith.addf %86, %91 : vector<4x256xf32>
    %93 = vector.extract_strided_slice %74 {offsets = [0, 3], sizes = [4, 1], strides = [1, 1]} : vector<4x4xf32> to vector<4x1xf32>
    %94 = vector.extract_strided_slice %72 {offsets = [3, 0], sizes = [1, 256], strides = [1, 1]} : vector<4x256xf32> to vector<1x256xf32>
    %95 = vector.broadcast %93 : vector<4x1xf32> to vector<4x256xf32>
    %96 = vector.broadcast %94 : vector<1x256xf32> to vector<4x256xf32>
    %97 = arith.mulf %95, %96 : vector<4x256xf32>
    %98 = arith.addf %92, %97 : vector<4x256xf32>
    %99 = vector.extract_strided_slice %1 {offsets = [0, 255], sizes = [4, 1], strides = [1, 1]} : vector<4x256xf32> to vector<4x1xf32>
    %100 = vector.extract_strided_slice %1 {offsets = [0, 0], sizes = [4, 255], strides = [1, 1]} : vector<4x256xf32> to vector<4x255xf32>
    %101 = tpu.concatenate %99, %100 in 1 : vector<4x1xf32>, vector<4x255xf32> -> vector<4x256xf32>
    %c3 = arith.constant 3 : index
    %c0_15 = arith.constant 0 : index
    %102 = vector.load %arg6[%c3, %c0_15] : memref<9x256xf32, #tpu.memory_space<vmem>>, vector<1x256xf32>
    %103 = vector.broadcast %102 : vector<1x256xf32> to vector<4x256xf32>
    %104 = arith.mulf %101, %103 : vector<4x256xf32>
    %c3_16 = arith.constant 3 : index
    %c0_17 = arith.constant 0 : index
    %c0_18 = arith.constant 0 : index
    %105 = vector.load %arg2[%c3_16, %c0_17, %c0_18] : memref<9x4x4xf32, #tpu.memory_space<vmem>>, vector<1x4x4xf32>
    %106 = vector.shape_cast %105 : vector<1x4x4xf32> to vector<4x4xf32>
    %107 = vector.extract_strided_slice %106 {offsets = [0, 0], sizes = [4, 1], strides = [1, 1]} : vector<4x4xf32> to vector<4x1xf32>
    %108 = vector.extract_strided_slice %104 {offsets = [0, 0], sizes = [1, 256], strides = [1, 1]} : vector<4x256xf32> to vector<1x256xf32>
    %109 = vector.broadcast %107 : vector<4x1xf32> to vector<4x256xf32>
    %110 = vector.broadcast %108 : vector<1x256xf32> to vector<4x256xf32>
    %111 = arith.mulf %109, %110 : vector<4x256xf32>
    %112 = arith.addf %98, %111 : vector<4x256xf32>
    %113 = vector.extract_strided_slice %106 {offsets = [0, 1], sizes = [4, 1], strides = [1, 1]} : vector<4x4xf32> to vector<4x1xf32>
    %114 = vector.extract_strided_slice %104 {offsets = [1, 0], sizes = [1, 256], strides = [1, 1]} : vector<4x256xf32> to vector<1x256xf32>
    %115 = vector.broadcast %113 : vector<4x1xf32> to vector<4x256xf32>
    %116 = vector.broadcast %114 : vector<1x256xf32> to vector<4x256xf32>
    %117 = arith.mulf %115, %116 : vector<4x256xf32>
    %118 = arith.addf %112, %117 : vector<4x256xf32>
    %119 = vector.extract_strided_slice %106 {offsets = [0, 2], sizes = [4, 1], strides = [1, 1]} : vector<4x4xf32> to vector<4x1xf32>
    %120 = vector.extract_strided_slice %104 {offsets = [2, 0], sizes = [1, 256], strides = [1, 1]} : vector<4x256xf32> to vector<1x256xf32>
    %121 = vector.broadcast %119 : vector<4x1xf32> to vector<4x256xf32>
    %122 = vector.broadcast %120 : vector<1x256xf32> to vector<4x256xf32>
    %123 = arith.mulf %121, %122 : vector<4x256xf32>
    %124 = arith.addf %118, %123 : vector<4x256xf32>
    %125 = vector.extract_strided_slice %106 {offsets = [0, 3], sizes = [4, 1], strides = [1, 1]} : vector<4x4xf32> to vector<4x1xf32>
    %126 = vector.extract_strided_slice %104 {offsets = [3, 0], sizes = [1, 256], strides = [1, 1]} : vector<4x256xf32> to vector<1x256xf32>
    %127 = vector.broadcast %125 : vector<4x1xf32> to vector<4x256xf32>
    %128 = vector.broadcast %126 : vector<1x256xf32> to vector<4x256xf32>
    %129 = arith.mulf %127, %128 : vector<4x256xf32>
    %130 = arith.addf %124, %129 : vector<4x256xf32>
    %c4 = arith.constant 4 : index
    %c0_19 = arith.constant 0 : index
    %131 = vector.load %arg6[%c4, %c0_19] : memref<9x256xf32, #tpu.memory_space<vmem>>, vector<1x256xf32>
    %132 = vector.broadcast %131 : vector<1x256xf32> to vector<4x256xf32>
    %133 = arith.mulf %1, %132 : vector<4x256xf32>
    %c4_20 = arith.constant 4 : index
    %c0_21 = arith.constant 0 : index
    %c0_22 = arith.constant 0 : index
    %134 = vector.load %arg2[%c4_20, %c0_21, %c0_22] : memref<9x4x4xf32, #tpu.memory_space<vmem>>, vector<1x4x4xf32>
    %135 = vector.shape_cast %134 : vector<1x4x4xf32> to vector<4x4xf32>
    %136 = vector.extract_strided_slice %135 {offsets = [0, 0], sizes = [4, 1], strides = [1, 1]} : vector<4x4xf32> to vector<4x1xf32>
    %137 = vector.extract_strided_slice %133 {offsets = [0, 0], sizes = [1, 256], strides = [1, 1]} : vector<4x256xf32> to vector<1x256xf32>
    %138 = vector.broadcast %136 : vector<4x1xf32> to vector<4x256xf32>
    %139 = vector.broadcast %137 : vector<1x256xf32> to vector<4x256xf32>
    %140 = arith.mulf %138, %139 : vector<4x256xf32>
    %141 = arith.addf %130, %140 : vector<4x256xf32>
    %142 = vector.extract_strided_slice %135 {offsets = [0, 1], sizes = [4, 1], strides = [1, 1]} : vector<4x4xf32> to vector<4x1xf32>
    %143 = vector.extract_strided_slice %133 {offsets = [1, 0], sizes = [1, 256], strides = [1, 1]} : vector<4x256xf32> to vector<1x256xf32>
    %144 = vector.broadcast %142 : vector<4x1xf32> to vector<4x256xf32>
    %145 = vector.broadcast %143 : vector<1x256xf32> to vector<4x256xf32>
    %146 = arith.mulf %144, %145 : vector<4x256xf32>
    %147 = arith.addf %141, %146 : vector<4x256xf32>
    %148 = vector.extract_strided_slice %135 {offsets = [0, 2], sizes = [4, 1], strides = [1, 1]} : vector<4x4xf32> to vector<4x1xf32>
    %149 = vector.extract_strided_slice %133 {offsets = [2, 0], sizes = [1, 256], strides = [1, 1]} : vector<4x256xf32> to vector<1x256xf32>
    %150 = vector.broadcast %148 : vector<4x1xf32> to vector<4x256xf32>
    %151 = vector.broadcast %149 : vector<1x256xf32> to vector<4x256xf32>
    %152 = arith.mulf %150, %151 : vector<4x256xf32>
    %153 = arith.addf %147, %152 : vector<4x256xf32>
    %154 = vector.extract_strided_slice %135 {offsets = [0, 3], sizes = [4, 1], strides = [1, 1]} : vector<4x4xf32> to vector<4x1xf32>
    %155 = vector.extract_strided_slice %133 {offsets = [3, 0], sizes = [1, 256], strides = [1, 1]} : vector<4x256xf32> to vector<1x256xf32>
    %156 = vector.broadcast %154 : vector<4x1xf32> to vector<4x256xf32>
    %157 = vector.broadcast %155 : vector<1x256xf32> to vector<4x256xf32>
    %158 = arith.mulf %156, %157 : vector<4x256xf32>
    %159 = arith.addf %153, %158 : vector<4x256xf32>
    %160 = vector.extract_strided_slice %1 {offsets = [0, 1], sizes = [4, 255], strides = [1, 1]} : vector<4x256xf32> to vector<4x255xf32>
    %161 = vector.extract_strided_slice %1 {offsets = [0, 0], sizes = [4, 1], strides = [1, 1]} : vector<4x256xf32> to vector<4x1xf32>
    %162 = tpu.concatenate %160, %161 in 1 : vector<4x255xf32>, vector<4x1xf32> -> vector<4x256xf32>
    %c5 = arith.constant 5 : index
    %c0_23 = arith.constant 0 : index
    %163 = vector.load %arg6[%c5, %c0_23] : memref<9x256xf32, #tpu.memory_space<vmem>>, vector<1x256xf32>
    %164 = vector.broadcast %163 : vector<1x256xf32> to vector<4x256xf32>
    %165 = arith.mulf %162, %164 : vector<4x256xf32>
    %c5_24 = arith.constant 5 : index
    %c0_25 = arith.constant 0 : index
    %c0_26 = arith.constant 0 : index
    %166 = vector.load %arg2[%c5_24, %c0_25, %c0_26] : memref<9x4x4xf32, #tpu.memory_space<vmem>>, vector<1x4x4xf32>
    %167 = vector.shape_cast %166 : vector<1x4x4xf32> to vector<4x4xf32>
    %168 = vector.extract_strided_slice %167 {offsets = [0, 0], sizes = [4, 1], strides = [1, 1]} : vector<4x4xf32> to vector<4x1xf32>
    %169 = vector.extract_strided_slice %165 {offsets = [0, 0], sizes = [1, 256], strides = [1, 1]} : vector<4x256xf32> to vector<1x256xf32>
    %170 = vector.broadcast %168 : vector<4x1xf32> to vector<4x256xf32>
    %171 = vector.broadcast %169 : vector<1x256xf32> to vector<4x256xf32>
    %172 = arith.mulf %170, %171 : vector<4x256xf32>
    %173 = arith.addf %159, %172 : vector<4x256xf32>
    %174 = vector.extract_strided_slice %167 {offsets = [0, 1], sizes = [4, 1], strides = [1, 1]} : vector<4x4xf32> to vector<4x1xf32>
    %175 = vector.extract_strided_slice %165 {offsets = [1, 0], sizes = [1, 256], strides = [1, 1]} : vector<4x256xf32> to vector<1x256xf32>
    %176 = vector.broadcast %174 : vector<4x1xf32> to vector<4x256xf32>
    %177 = vector.broadcast %175 : vector<1x256xf32> to vector<4x256xf32>
    %178 = arith.mulf %176, %177 : vector<4x256xf32>
    %179 = arith.addf %173, %178 : vector<4x256xf32>
    %180 = vector.extract_strided_slice %167 {offsets = [0, 2], sizes = [4, 1], strides = [1, 1]} : vector<4x4xf32> to vector<4x1xf32>
    %181 = vector.extract_strided_slice %165 {offsets = [2, 0], sizes = [1, 256], strides = [1, 1]} : vector<4x256xf32> to vector<1x256xf32>
    %182 = vector.broadcast %180 : vector<4x1xf32> to vector<4x256xf32>
    %183 = vector.broadcast %181 : vector<1x256xf32> to vector<4x256xf32>
    %184 = arith.mulf %182, %183 : vector<4x256xf32>
    %185 = arith.addf %179, %184 : vector<4x256xf32>
    %186 = vector.extract_strided_slice %167 {offsets = [0, 3], sizes = [4, 1], strides = [1, 1]} : vector<4x4xf32> to vector<4x1xf32>
    %187 = vector.extract_strided_slice %165 {offsets = [3, 0], sizes = [1, 256], strides = [1, 1]} : vector<4x256xf32> to vector<1x256xf32>
    %188 = vector.broadcast %186 : vector<4x1xf32> to vector<4x256xf32>
    %189 = vector.broadcast %187 : vector<1x256xf32> to vector<4x256xf32>
    %190 = arith.mulf %188, %189 : vector<4x256xf32>
    %191 = arith.addf %185, %190 : vector<4x256xf32>
    %192 = vector.extract_strided_slice %1 {offsets = [0, 15], sizes = [4, 241], strides = [1, 1]} : vector<4x256xf32> to vector<4x241xf32>
    %193 = vector.extract_strided_slice %1 {offsets = [0, 0], sizes = [4, 15], strides = [1, 1]} : vector<4x256xf32> to vector<4x15xf32>
    %194 = tpu.concatenate %192, %193 in 1 : vector<4x241xf32>, vector<4x15xf32> -> vector<4x256xf32>
    %c6 = arith.constant 6 : index
    %c0_27 = arith.constant 0 : index
    %195 = vector.load %arg6[%c6, %c0_27] : memref<9x256xf32, #tpu.memory_space<vmem>>, vector<1x256xf32>
    %196 = vector.broadcast %195 : vector<1x256xf32> to vector<4x256xf32>
    %197 = arith.mulf %194, %196 : vector<4x256xf32>
    %c6_28 = arith.constant 6 : index
    %c0_29 = arith.constant 0 : index
    %c0_30 = arith.constant 0 : index
    %198 = vector.load %arg2[%c6_28, %c0_29, %c0_30] : memref<9x4x4xf32, #tpu.memory_space<vmem>>, vector<1x4x4xf32>
    %199 = vector.shape_cast %198 : vector<1x4x4xf32> to vector<4x4xf32>
    %200 = vector.extract_strided_slice %199 {offsets = [0, 0], sizes = [4, 1], strides = [1, 1]} : vector<4x4xf32> to vector<4x1xf32>
    %201 = vector.extract_strided_slice %197 {offsets = [0, 0], sizes = [1, 256], strides = [1, 1]} : vector<4x256xf32> to vector<1x256xf32>
    %202 = vector.broadcast %200 : vector<4x1xf32> to vector<4x256xf32>
    %203 = vector.broadcast %201 : vector<1x256xf32> to vector<4x256xf32>
    %204 = arith.mulf %202, %203 : vector<4x256xf32>
    %205 = arith.addf %191, %204 : vector<4x256xf32>
    %206 = vector.extract_strided_slice %199 {offsets = [0, 1], sizes = [4, 1], strides = [1, 1]} : vector<4x4xf32> to vector<4x1xf32>
    %207 = vector.extract_strided_slice %197 {offsets = [1, 0], sizes = [1, 256], strides = [1, 1]} : vector<4x256xf32> to vector<1x256xf32>
    %208 = vector.broadcast %206 : vector<4x1xf32> to vector<4x256xf32>
    %209 = vector.broadcast %207 : vector<1x256xf32> to vector<4x256xf32>
    %210 = arith.mulf %208, %209 : vector<4x256xf32>
    %211 = arith.addf %205, %210 : vector<4x256xf32>
    %212 = vector.extract_strided_slice %199 {offsets = [0, 2], sizes = [4, 1], strides = [1, 1]} : vector<4x4xf32> to vector<4x1xf32>
    %213 = vector.extract_strided_slice %197 {offsets = [2, 0], sizes = [1, 256], strides = [1, 1]} : vector<4x256xf32> to vector<1x256xf32>
    %214 = vector.broadcast %212 : vector<4x1xf32> to vector<4x256xf32>
    %215 = vector.broadcast %213 : vector<1x256xf32> to vector<4x256xf32>
    %216 = arith.mulf %214, %215 : vector<4x256xf32>
    %217 = arith.addf %211, %216 : vector<4x256xf32>
    %218 = vector.extract_strided_slice %199 {offsets = [0, 3], sizes = [4, 1], strides = [1, 1]} : vector<4x4xf32> to vector<4x1xf32>
    %219 = vector.extract_strided_slice %197 {offsets = [3, 0], sizes = [1, 256], strides = [1, 1]} : vector<4x256xf32> to vector<1x256xf32>
    %220 = vector.broadcast %218 : vector<4x1xf32> to vector<4x256xf32>
    %221 = vector.broadcast %219 : vector<1x256xf32> to vector<4x256xf32>
    %222 = arith.mulf %220, %221 : vector<4x256xf32>
    %223 = arith.addf %217, %222 : vector<4x256xf32>
    %224 = vector.extract_strided_slice %1 {offsets = [0, 16], sizes = [4, 240], strides = [1, 1]} : vector<4x256xf32> to vector<4x240xf32>
    %225 = vector.extract_strided_slice %1 {offsets = [0, 0], sizes = [4, 16], strides = [1, 1]} : vector<4x256xf32> to vector<4x16xf32>
    %226 = tpu.concatenate %224, %225 in 1 : vector<4x240xf32>, vector<4x16xf32> -> vector<4x256xf32>
    %c7 = arith.constant 7 : index
    %c0_31 = arith.constant 0 : index
    %227 = vector.load %arg6[%c7, %c0_31] : memref<9x256xf32, #tpu.memory_space<vmem>>, vector<1x256xf32>
    %228 = vector.broadcast %227 : vector<1x256xf32> to vector<4x256xf32>
    %229 = arith.mulf %226, %228 : vector<4x256xf32>
    %c7_32 = arith.constant 7 : index
    %c0_33 = arith.constant 0 : index
    %c0_34 = arith.constant 0 : index
    %230 = vector.load %arg2[%c7_32, %c0_33, %c0_34] : memref<9x4x4xf32, #tpu.memory_space<vmem>>, vector<1x4x4xf32>
    %231 = vector.shape_cast %230 : vector<1x4x4xf32> to vector<4x4xf32>
    %232 = vector.extract_strided_slice %231 {offsets = [0, 0], sizes = [4, 1], strides = [1, 1]} : vector<4x4xf32> to vector<4x1xf32>
    %233 = vector.extract_strided_slice %229 {offsets = [0, 0], sizes = [1, 256], strides = [1, 1]} : vector<4x256xf32> to vector<1x256xf32>
    %234 = vector.broadcast %232 : vector<4x1xf32> to vector<4x256xf32>
    %235 = vector.broadcast %233 : vector<1x256xf32> to vector<4x256xf32>
    %236 = arith.mulf %234, %235 : vector<4x256xf32>
    %237 = arith.addf %223, %236 : vector<4x256xf32>
    %238 = vector.extract_strided_slice %231 {offsets = [0, 1], sizes = [4, 1], strides = [1, 1]} : vector<4x4xf32> to vector<4x1xf32>
    %239 = vector.extract_strided_slice %229 {offsets = [1, 0], sizes = [1, 256], strides = [1, 1]} : vector<4x256xf32> to vector<1x256xf32>
    %240 = vector.broadcast %238 : vector<4x1xf32> to vector<4x256xf32>
    %241 = vector.broadcast %239 : vector<1x256xf32> to vector<4x256xf32>
    %242 = arith.mulf %240, %241 : vector<4x256xf32>
    %243 = arith.addf %237, %242 : vector<4x256xf32>
    %244 = vector.extract_strided_slice %231 {offsets = [0, 2], sizes = [4, 1], strides = [1, 1]} : vector<4x4xf32> to vector<4x1xf32>
    %245 = vector.extract_strided_slice %229 {offsets = [2, 0], sizes = [1, 256], strides = [1, 1]} : vector<4x256xf32> to vector<1x256xf32>
    %246 = vector.broadcast %244 : vector<4x1xf32> to vector<4x256xf32>
    %247 = vector.broadcast %245 : vector<1x256xf32> to vector<4x256xf32>
    %248 = arith.mulf %246, %247 : vector<4x256xf32>
    %249 = arith.addf %243, %248 : vector<4x256xf32>
    %250 = vector.extract_strided_slice %231 {offsets = [0, 3], sizes = [4, 1], strides = [1, 1]} : vector<4x4xf32> to vector<4x1xf32>
    %251 = vector.extract_strided_slice %229 {offsets = [3, 0], sizes = [1, 256], strides = [1, 1]} : vector<4x256xf32> to vector<1x256xf32>
    %252 = vector.broadcast %250 : vector<4x1xf32> to vector<4x256xf32>
    %253 = vector.broadcast %251 : vector<1x256xf32> to vector<4x256xf32>
    %254 = arith.mulf %252, %253 : vector<4x256xf32>
    %255 = arith.addf %249, %254 : vector<4x256xf32>
    %256 = vector.extract_strided_slice %1 {offsets = [0, 17], sizes = [4, 239], strides = [1, 1]} : vector<4x256xf32> to vector<4x239xf32>
    %257 = vector.extract_strided_slice %1 {offsets = [0, 0], sizes = [4, 17], strides = [1, 1]} : vector<4x256xf32> to vector<4x17xf32>
    %258 = tpu.concatenate %256, %257 in 1 : vector<4x239xf32>, vector<4x17xf32> -> vector<4x256xf32>
    %c8 = arith.constant 8 : index
    %c0_35 = arith.constant 0 : index
    %259 = vector.load %arg6[%c8, %c0_35] : memref<9x256xf32, #tpu.memory_space<vmem>>, vector<1x256xf32>
    %260 = vector.broadcast %259 : vector<1x256xf32> to vector<4x256xf32>
    %261 = arith.mulf %258, %260 : vector<4x256xf32>
    %c8_36 = arith.constant 8 : index
    %c0_37 = arith.constant 0 : index
    %c0_38 = arith.constant 0 : index
    %262 = vector.load %arg2[%c8_36, %c0_37, %c0_38] : memref<9x4x4xf32, #tpu.memory_space<vmem>>, vector<1x4x4xf32>
    %263 = vector.shape_cast %262 : vector<1x4x4xf32> to vector<4x4xf32>
    %264 = vector.extract_strided_slice %263 {offsets = [0, 0], sizes = [4, 1], strides = [1, 1]} : vector<4x4xf32> to vector<4x1xf32>
    %265 = vector.extract_strided_slice %261 {offsets = [0, 0], sizes = [1, 256], strides = [1, 1]} : vector<4x256xf32> to vector<1x256xf32>
    %266 = vector.broadcast %264 : vector<4x1xf32> to vector<4x256xf32>
    %267 = vector.broadcast %265 : vector<1x256xf32> to vector<4x256xf32>
    %268 = arith.mulf %266, %267 : vector<4x256xf32>
    %269 = arith.addf %255, %268 : vector<4x256xf32>
    %270 = vector.extract_strided_slice %263 {offsets = [0, 1], sizes = [4, 1], strides = [1, 1]} : vector<4x4xf32> to vector<4x1xf32>
    %271 = vector.extract_strided_slice %261 {offsets = [1, 0], sizes = [1, 256], strides = [1, 1]} : vector<4x256xf32> to vector<1x256xf32>
    %272 = vector.broadcast %270 : vector<4x1xf32> to vector<4x256xf32>
    %273 = vector.broadcast %271 : vector<1x256xf32> to vector<4x256xf32>
    %274 = arith.mulf %272, %273 : vector<4x256xf32>
    %275 = arith.addf %269, %274 : vector<4x256xf32>
    %276 = vector.extract_strided_slice %263 {offsets = [0, 2], sizes = [4, 1], strides = [1, 1]} : vector<4x4xf32> to vector<4x1xf32>
    %277 = vector.extract_strided_slice %261 {offsets = [2, 0], sizes = [1, 256], strides = [1, 1]} : vector<4x256xf32> to vector<1x256xf32>
    %278 = vector.broadcast %276 : vector<4x1xf32> to vector<4x256xf32>
    %279 = vector.broadcast %277 : vector<1x256xf32> to vector<4x256xf32>
    %280 = arith.mulf %278, %279 : vector<4x256xf32>
    %281 = arith.addf %275, %280 : vector<4x256xf32>
    %282 = vector.extract_strided_slice %263 {offsets = [0, 3], sizes = [4, 1], strides = [1, 1]} : vector<4x4xf32> to vector<4x1xf32>
    %283 = vector.extract_strided_slice %261 {offsets = [3, 0], sizes = [1, 256], strides = [1, 1]} : vector<4x256xf32> to vector<1x256xf32>
    %284 = vector.broadcast %282 : vector<4x1xf32> to vector<4x256xf32>
    %285 = vector.broadcast %283 : vector<1x256xf32> to vector<4x256xf32>
    %286 = arith.mulf %284, %285 : vector<4x256xf32>
    %287 = arith.addf %281, %286 : vector<4x256xf32>
    %c0_39 = arith.constant 0 : index
    %c0_40 = arith.constant 0 : index
    %288 = vector.load %arg4[%c0_39, %c0_40] : memref<4x1xf32, #tpu.memory_space<vmem>>, vector<4x1xf32>
    %289 = vector.broadcast %288 : vector<4x1xf32> to vector<4x256xf32>
    %290 = arith.addf %287, %289 : vector<4x256xf32>
    %cst_41 = arith.constant 0.000000e+00 : f32
    %291 = vector.broadcast %cst_41 : f32 to vector<4x256xf32>
    %292 = arith.cmpf oge, %290, %291 : vector<4x256xf32>
    %cst_42 = arith.constant 2.000000e-01 : f32
    %293 = vector.broadcast %cst_42 : f32 to vector<4x256xf32>
    %294 = arith.mulf %293, %290 : vector<4x256xf32>
    %295 = arith.select %292, %290, %294 : vector<4x256xi1>, vector<4x256xf32>
    %cst_43 = arith.constant 0.000000e+00 : f32
    %296 = vector.broadcast %cst_43 : f32 to vector<4x256xf32>
    %297 = vector.extract_strided_slice %295 {offsets = [0, 239], sizes = [4, 17], strides = [1, 1]} : vector<4x256xf32> to vector<4x17xf32>
    %298 = vector.extract_strided_slice %295 {offsets = [0, 0], sizes = [4, 239], strides = [1, 1]} : vector<4x256xf32> to vector<4x239xf32>
    %299 = tpu.concatenate %297, %298 in 1 : vector<4x17xf32>, vector<4x239xf32> -> vector<4x256xf32>
    %c0_44 = arith.constant 0 : index
    %c0_45 = arith.constant 0 : index
    %300 = vector.load %arg6[%c0_44, %c0_45] : memref<9x256xf32, #tpu.memory_space<vmem>>, vector<1x256xf32>
    %301 = vector.broadcast %300 : vector<1x256xf32> to vector<4x256xf32>
    %302 = arith.mulf %299, %301 : vector<4x256xf32>
    %c0_46 = arith.constant 0 : index
    %c0_47 = arith.constant 0 : index
    %c0_48 = arith.constant 0 : index
    %303 = vector.load %arg3[%c0_46, %c0_47, %c0_48] : memref<9x4x4xf32, #tpu.memory_space<vmem>>, vector<1x4x4xf32>
    %304 = vector.shape_cast %303 : vector<1x4x4xf32> to vector<4x4xf32>
    %305 = vector.extract_strided_slice %304 {offsets = [0, 0], sizes = [4, 1], strides = [1, 1]} : vector<4x4xf32> to vector<4x1xf32>
    %306 = vector.extract_strided_slice %302 {offsets = [0, 0], sizes = [1, 256], strides = [1, 1]} : vector<4x256xf32> to vector<1x256xf32>
    %307 = vector.broadcast %305 : vector<4x1xf32> to vector<4x256xf32>
    %308 = vector.broadcast %306 : vector<1x256xf32> to vector<4x256xf32>
    %309 = arith.mulf %307, %308 : vector<4x256xf32>
    %310 = arith.addf %296, %309 : vector<4x256xf32>
    %311 = vector.extract_strided_slice %304 {offsets = [0, 1], sizes = [4, 1], strides = [1, 1]} : vector<4x4xf32> to vector<4x1xf32>
    %312 = vector.extract_strided_slice %302 {offsets = [1, 0], sizes = [1, 256], strides = [1, 1]} : vector<4x256xf32> to vector<1x256xf32>
    %313 = vector.broadcast %311 : vector<4x1xf32> to vector<4x256xf32>
    %314 = vector.broadcast %312 : vector<1x256xf32> to vector<4x256xf32>
    %315 = arith.mulf %313, %314 : vector<4x256xf32>
    %316 = arith.addf %310, %315 : vector<4x256xf32>
    %317 = vector.extract_strided_slice %304 {offsets = [0, 2], sizes = [4, 1], strides = [1, 1]} : vector<4x4xf32> to vector<4x1xf32>
    %318 = vector.extract_strided_slice %302 {offsets = [2, 0], sizes = [1, 256], strides = [1, 1]} : vector<4x256xf32> to vector<1x256xf32>
    %319 = vector.broadcast %317 : vector<4x1xf32> to vector<4x256xf32>
    %320 = vector.broadcast %318 : vector<1x256xf32> to vector<4x256xf32>
    %321 = arith.mulf %319, %320 : vector<4x256xf32>
    %322 = arith.addf %316, %321 : vector<4x256xf32>
    %323 = vector.extract_strided_slice %304 {offsets = [0, 3], sizes = [4, 1], strides = [1, 1]} : vector<4x4xf32> to vector<4x1xf32>
    %324 = vector.extract_strided_slice %302 {offsets = [3, 0], sizes = [1, 256], strides = [1, 1]} : vector<4x256xf32> to vector<1x256xf32>
    %325 = vector.broadcast %323 : vector<4x1xf32> to vector<4x256xf32>
    %326 = vector.broadcast %324 : vector<1x256xf32> to vector<4x256xf32>
    %327 = arith.mulf %325, %326 : vector<4x256xf32>
    %328 = arith.addf %322, %327 : vector<4x256xf32>
    %329 = vector.extract_strided_slice %295 {offsets = [0, 240], sizes = [4, 16], strides = [1, 1]} : vector<4x256xf32> to vector<4x16xf32>
    %330 = vector.extract_strided_slice %295 {offsets = [0, 0], sizes = [4, 240], strides = [1, 1]} : vector<4x256xf32> to vector<4x240xf32>
    %331 = tpu.concatenate %329, %330 in 1 : vector<4x16xf32>, vector<4x240xf32> -> vector<4x256xf32>
    %c1_49 = arith.constant 1 : index
    %c0_50 = arith.constant 0 : index
    %332 = vector.load %arg6[%c1_49, %c0_50] : memref<9x256xf32, #tpu.memory_space<vmem>>, vector<1x256xf32>
    %333 = vector.broadcast %332 : vector<1x256xf32> to vector<4x256xf32>
    %334 = arith.mulf %331, %333 : vector<4x256xf32>
    %c1_51 = arith.constant 1 : index
    %c0_52 = arith.constant 0 : index
    %c0_53 = arith.constant 0 : index
    %335 = vector.load %arg3[%c1_51, %c0_52, %c0_53] : memref<9x4x4xf32, #tpu.memory_space<vmem>>, vector<1x4x4xf32>
    %336 = vector.shape_cast %335 : vector<1x4x4xf32> to vector<4x4xf32>
    %337 = vector.extract_strided_slice %336 {offsets = [0, 0], sizes = [4, 1], strides = [1, 1]} : vector<4x4xf32> to vector<4x1xf32>
    %338 = vector.extract_strided_slice %334 {offsets = [0, 0], sizes = [1, 256], strides = [1, 1]} : vector<4x256xf32> to vector<1x256xf32>
    %339 = vector.broadcast %337 : vector<4x1xf32> to vector<4x256xf32>
    %340 = vector.broadcast %338 : vector<1x256xf32> to vector<4x256xf32>
    %341 = arith.mulf %339, %340 : vector<4x256xf32>
    %342 = arith.addf %328, %341 : vector<4x256xf32>
    %343 = vector.extract_strided_slice %336 {offsets = [0, 1], sizes = [4, 1], strides = [1, 1]} : vector<4x4xf32> to vector<4x1xf32>
    %344 = vector.extract_strided_slice %334 {offsets = [1, 0], sizes = [1, 256], strides = [1, 1]} : vector<4x256xf32> to vector<1x256xf32>
    %345 = vector.broadcast %343 : vector<4x1xf32> to vector<4x256xf32>
    %346 = vector.broadcast %344 : vector<1x256xf32> to vector<4x256xf32>
    %347 = arith.mulf %345, %346 : vector<4x256xf32>
    %348 = arith.addf %342, %347 : vector<4x256xf32>
    %349 = vector.extract_strided_slice %336 {offsets = [0, 2], sizes = [4, 1], strides = [1, 1]} : vector<4x4xf32> to vector<4x1xf32>
    %350 = vector.extract_strided_slice %334 {offsets = [2, 0], sizes = [1, 256], strides = [1, 1]} : vector<4x256xf32> to vector<1x256xf32>
    %351 = vector.broadcast %349 : vector<4x1xf32> to vector<4x256xf32>
    %352 = vector.broadcast %350 : vector<1x256xf32> to vector<4x256xf32>
    %353 = arith.mulf %351, %352 : vector<4x256xf32>
    %354 = arith.addf %348, %353 : vector<4x256xf32>
    %355 = vector.extract_strided_slice %336 {offsets = [0, 3], sizes = [4, 1], strides = [1, 1]} : vector<4x4xf32> to vector<4x1xf32>
    %356 = vector.extract_strided_slice %334 {offsets = [3, 0], sizes = [1, 256], strides = [1, 1]} : vector<4x256xf32> to vector<1x256xf32>
    %357 = vector.broadcast %355 : vector<4x1xf32> to vector<4x256xf32>
    %358 = vector.broadcast %356 : vector<1x256xf32> to vector<4x256xf32>
    %359 = arith.mulf %357, %358 : vector<4x256xf32>
    %360 = arith.addf %354, %359 : vector<4x256xf32>
    %361 = vector.extract_strided_slice %295 {offsets = [0, 241], sizes = [4, 15], strides = [1, 1]} : vector<4x256xf32> to vector<4x15xf32>
    %362 = vector.extract_strided_slice %295 {offsets = [0, 0], sizes = [4, 241], strides = [1, 1]} : vector<4x256xf32> to vector<4x241xf32>
    %363 = tpu.concatenate %361, %362 in 1 : vector<4x15xf32>, vector<4x241xf32> -> vector<4x256xf32>
    %c2_54 = arith.constant 2 : index
    %c0_55 = arith.constant 0 : index
    %364 = vector.load %arg6[%c2_54, %c0_55] : memref<9x256xf32, #tpu.memory_space<vmem>>, vector<1x256xf32>
    %365 = vector.broadcast %364 : vector<1x256xf32> to vector<4x256xf32>
    %366 = arith.mulf %363, %365 : vector<4x256xf32>
    %c2_56 = arith.constant 2 : index
    %c0_57 = arith.constant 0 : index
    %c0_58 = arith.constant 0 : index
    %367 = vector.load %arg3[%c2_56, %c0_57, %c0_58] : memref<9x4x4xf32, #tpu.memory_space<vmem>>, vector<1x4x4xf32>
    %368 = vector.shape_cast %367 : vector<1x4x4xf32> to vector<4x4xf32>
    %369 = vector.extract_strided_slice %368 {offsets = [0, 0], sizes = [4, 1], strides = [1, 1]} : vector<4x4xf32> to vector<4x1xf32>
    %370 = vector.extract_strided_slice %366 {offsets = [0, 0], sizes = [1, 256], strides = [1, 1]} : vector<4x256xf32> to vector<1x256xf32>
    %371 = vector.broadcast %369 : vector<4x1xf32> to vector<4x256xf32>
    %372 = vector.broadcast %370 : vector<1x256xf32> to vector<4x256xf32>
    %373 = arith.mulf %371, %372 : vector<4x256xf32>
    %374 = arith.addf %360, %373 : vector<4x256xf32>
    %375 = vector.extract_strided_slice %368 {offsets = [0, 1], sizes = [4, 1], strides = [1, 1]} : vector<4x4xf32> to vector<4x1xf32>
    %376 = vector.extract_strided_slice %366 {offsets = [1, 0], sizes = [1, 256], strides = [1, 1]} : vector<4x256xf32> to vector<1x256xf32>
    %377 = vector.broadcast %375 : vector<4x1xf32> to vector<4x256xf32>
    %378 = vector.broadcast %376 : vector<1x256xf32> to vector<4x256xf32>
    %379 = arith.mulf %377, %378 : vector<4x256xf32>
    %380 = arith.addf %374, %379 : vector<4x256xf32>
    %381 = vector.extract_strided_slice %368 {offsets = [0, 2], sizes = [4, 1], strides = [1, 1]} : vector<4x4xf32> to vector<4x1xf32>
    %382 = vector.extract_strided_slice %366 {offsets = [2, 0], sizes = [1, 256], strides = [1, 1]} : vector<4x256xf32> to vector<1x256xf32>
    %383 = vector.broadcast %381 : vector<4x1xf32> to vector<4x256xf32>
    %384 = vector.broadcast %382 : vector<1x256xf32> to vector<4x256xf32>
    %385 = arith.mulf %383, %384 : vector<4x256xf32>
    %386 = arith.addf %380, %385 : vector<4x256xf32>
    %387 = vector.extract_strided_slice %368 {offsets = [0, 3], sizes = [4, 1], strides = [1, 1]} : vector<4x4xf32> to vector<4x1xf32>
    %388 = vector.extract_strided_slice %366 {offsets = [3, 0], sizes = [1, 256], strides = [1, 1]} : vector<4x256xf32> to vector<1x256xf32>
    %389 = vector.broadcast %387 : vector<4x1xf32> to vector<4x256xf32>
    %390 = vector.broadcast %388 : vector<1x256xf32> to vector<4x256xf32>
    %391 = arith.mulf %389, %390 : vector<4x256xf32>
    %392 = arith.addf %386, %391 : vector<4x256xf32>
    %393 = vector.extract_strided_slice %295 {offsets = [0, 255], sizes = [4, 1], strides = [1, 1]} : vector<4x256xf32> to vector<4x1xf32>
    %394 = vector.extract_strided_slice %295 {offsets = [0, 0], sizes = [4, 255], strides = [1, 1]} : vector<4x256xf32> to vector<4x255xf32>
    %395 = tpu.concatenate %393, %394 in 1 : vector<4x1xf32>, vector<4x255xf32> -> vector<4x256xf32>
    %c3_59 = arith.constant 3 : index
    %c0_60 = arith.constant 0 : index
    %396 = vector.load %arg6[%c3_59, %c0_60] : memref<9x256xf32, #tpu.memory_space<vmem>>, vector<1x256xf32>
    %397 = vector.broadcast %396 : vector<1x256xf32> to vector<4x256xf32>
    %398 = arith.mulf %395, %397 : vector<4x256xf32>
    %c3_61 = arith.constant 3 : index
    %c0_62 = arith.constant 0 : index
    %c0_63 = arith.constant 0 : index
    %399 = vector.load %arg3[%c3_61, %c0_62, %c0_63] : memref<9x4x4xf32, #tpu.memory_space<vmem>>, vector<1x4x4xf32>
    %400 = vector.shape_cast %399 : vector<1x4x4xf32> to vector<4x4xf32>
    %401 = vector.extract_strided_slice %400 {offsets = [0, 0], sizes = [4, 1], strides = [1, 1]} : vector<4x4xf32> to vector<4x1xf32>
    %402 = vector.extract_strided_slice %398 {offsets = [0, 0], sizes = [1, 256], strides = [1, 1]} : vector<4x256xf32> to vector<1x256xf32>
    %403 = vector.broadcast %401 : vector<4x1xf32> to vector<4x256xf32>
    %404 = vector.broadcast %402 : vector<1x256xf32> to vector<4x256xf32>
    %405 = arith.mulf %403, %404 : vector<4x256xf32>
    %406 = arith.addf %392, %405 : vector<4x256xf32>
    %407 = vector.extract_strided_slice %400 {offsets = [0, 1], sizes = [4, 1], strides = [1, 1]} : vector<4x4xf32> to vector<4x1xf32>
    %408 = vector.extract_strided_slice %398 {offsets = [1, 0], sizes = [1, 256], strides = [1, 1]} : vector<4x256xf32> to vector<1x256xf32>
    %409 = vector.broadcast %407 : vector<4x1xf32> to vector<4x256xf32>
    %410 = vector.broadcast %408 : vector<1x256xf32> to vector<4x256xf32>
    %411 = arith.mulf %409, %410 : vector<4x256xf32>
    %412 = arith.addf %406, %411 : vector<4x256xf32>
    %413 = vector.extract_strided_slice %400 {offsets = [0, 2], sizes = [4, 1], strides = [1, 1]} : vector<4x4xf32> to vector<4x1xf32>
    %414 = vector.extract_strided_slice %398 {offsets = [2, 0], sizes = [1, 256], strides = [1, 1]} : vector<4x256xf32> to vector<1x256xf32>
    %415 = vector.broadcast %413 : vector<4x1xf32> to vector<4x256xf32>
    %416 = vector.broadcast %414 : vector<1x256xf32> to vector<4x256xf32>
    %417 = arith.mulf %415, %416 : vector<4x256xf32>
    %418 = arith.addf %412, %417 : vector<4x256xf32>
    %419 = vector.extract_strided_slice %400 {offsets = [0, 3], sizes = [4, 1], strides = [1, 1]} : vector<4x4xf32> to vector<4x1xf32>
    %420 = vector.extract_strided_slice %398 {offsets = [3, 0], sizes = [1, 256], strides = [1, 1]} : vector<4x256xf32> to vector<1x256xf32>
    %421 = vector.broadcast %419 : vector<4x1xf32> to vector<4x256xf32>
    %422 = vector.broadcast %420 : vector<1x256xf32> to vector<4x256xf32>
    %423 = arith.mulf %421, %422 : vector<4x256xf32>
    %424 = arith.addf %418, %423 : vector<4x256xf32>
    %c4_64 = arith.constant 4 : index
    %c0_65 = arith.constant 0 : index
    %425 = vector.load %arg6[%c4_64, %c0_65] : memref<9x256xf32, #tpu.memory_space<vmem>>, vector<1x256xf32>
    %426 = vector.broadcast %425 : vector<1x256xf32> to vector<4x256xf32>
    %427 = arith.mulf %295, %426 : vector<4x256xf32>
    %c4_66 = arith.constant 4 : index
    %c0_67 = arith.constant 0 : index
    %c0_68 = arith.constant 0 : index
    %428 = vector.load %arg3[%c4_66, %c0_67, %c0_68] : memref<9x4x4xf32, #tpu.memory_space<vmem>>, vector<1x4x4xf32>
    %429 = vector.shape_cast %428 : vector<1x4x4xf32> to vector<4x4xf32>
    %430 = vector.extract_strided_slice %429 {offsets = [0, 0], sizes = [4, 1], strides = [1, 1]} : vector<4x4xf32> to vector<4x1xf32>
    %431 = vector.extract_strided_slice %427 {offsets = [0, 0], sizes = [1, 256], strides = [1, 1]} : vector<4x256xf32> to vector<1x256xf32>
    %432 = vector.broadcast %430 : vector<4x1xf32> to vector<4x256xf32>
    %433 = vector.broadcast %431 : vector<1x256xf32> to vector<4x256xf32>
    %434 = arith.mulf %432, %433 : vector<4x256xf32>
    %435 = arith.addf %424, %434 : vector<4x256xf32>
    %436 = vector.extract_strided_slice %429 {offsets = [0, 1], sizes = [4, 1], strides = [1, 1]} : vector<4x4xf32> to vector<4x1xf32>
    %437 = vector.extract_strided_slice %427 {offsets = [1, 0], sizes = [1, 256], strides = [1, 1]} : vector<4x256xf32> to vector<1x256xf32>
    %438 = vector.broadcast %436 : vector<4x1xf32> to vector<4x256xf32>
    %439 = vector.broadcast %437 : vector<1x256xf32> to vector<4x256xf32>
    %440 = arith.mulf %438, %439 : vector<4x256xf32>
    %441 = arith.addf %435, %440 : vector<4x256xf32>
    %442 = vector.extract_strided_slice %429 {offsets = [0, 2], sizes = [4, 1], strides = [1, 1]} : vector<4x4xf32> to vector<4x1xf32>
    %443 = vector.extract_strided_slice %427 {offsets = [2, 0], sizes = [1, 256], strides = [1, 1]} : vector<4x256xf32> to vector<1x256xf32>
    %444 = vector.broadcast %442 : vector<4x1xf32> to vector<4x256xf32>
    %445 = vector.broadcast %443 : vector<1x256xf32> to vector<4x256xf32>
    %446 = arith.mulf %444, %445 : vector<4x256xf32>
    %447 = arith.addf %441, %446 : vector<4x256xf32>
    %448 = vector.extract_strided_slice %429 {offsets = [0, 3], sizes = [4, 1], strides = [1, 1]} : vector<4x4xf32> to vector<4x1xf32>
    %449 = vector.extract_strided_slice %427 {offsets = [3, 0], sizes = [1, 256], strides = [1, 1]} : vector<4x256xf32> to vector<1x256xf32>
    %450 = vector.broadcast %448 : vector<4x1xf32> to vector<4x256xf32>
    %451 = vector.broadcast %449 : vector<1x256xf32> to vector<4x256xf32>
    %452 = arith.mulf %450, %451 : vector<4x256xf32>
    %453 = arith.addf %447, %452 : vector<4x256xf32>
    %454 = vector.extract_strided_slice %295 {offsets = [0, 1], sizes = [4, 255], strides = [1, 1]} : vector<4x256xf32> to vector<4x255xf32>
    %455 = vector.extract_strided_slice %295 {offsets = [0, 0], sizes = [4, 1], strides = [1, 1]} : vector<4x256xf32> to vector<4x1xf32>
    %456 = tpu.concatenate %454, %455 in 1 : vector<4x255xf32>, vector<4x1xf32> -> vector<4x256xf32>
    %c5_69 = arith.constant 5 : index
    %c0_70 = arith.constant 0 : index
    %457 = vector.load %arg6[%c5_69, %c0_70] : memref<9x256xf32, #tpu.memory_space<vmem>>, vector<1x256xf32>
    %458 = vector.broadcast %457 : vector<1x256xf32> to vector<4x256xf32>
    %459 = arith.mulf %456, %458 : vector<4x256xf32>
    %c5_71 = arith.constant 5 : index
    %c0_72 = arith.constant 0 : index
    %c0_73 = arith.constant 0 : index
    %460 = vector.load %arg3[%c5_71, %c0_72, %c0_73] : memref<9x4x4xf32, #tpu.memory_space<vmem>>, vector<1x4x4xf32>
    %461 = vector.shape_cast %460 : vector<1x4x4xf32> to vector<4x4xf32>
    %462 = vector.extract_strided_slice %461 {offsets = [0, 0], sizes = [4, 1], strides = [1, 1]} : vector<4x4xf32> to vector<4x1xf32>
    %463 = vector.extract_strided_slice %459 {offsets = [0, 0], sizes = [1, 256], strides = [1, 1]} : vector<4x256xf32> to vector<1x256xf32>
    %464 = vector.broadcast %462 : vector<4x1xf32> to vector<4x256xf32>
    %465 = vector.broadcast %463 : vector<1x256xf32> to vector<4x256xf32>
    %466 = arith.mulf %464, %465 : vector<4x256xf32>
    %467 = arith.addf %453, %466 : vector<4x256xf32>
    %468 = vector.extract_strided_slice %461 {offsets = [0, 1], sizes = [4, 1], strides = [1, 1]} : vector<4x4xf32> to vector<4x1xf32>
    %469 = vector.extract_strided_slice %459 {offsets = [1, 0], sizes = [1, 256], strides = [1, 1]} : vector<4x256xf32> to vector<1x256xf32>
    %470 = vector.broadcast %468 : vector<4x1xf32> to vector<4x256xf32>
    %471 = vector.broadcast %469 : vector<1x256xf32> to vector<4x256xf32>
    %472 = arith.mulf %470, %471 : vector<4x256xf32>
    %473 = arith.addf %467, %472 : vector<4x256xf32>
    %474 = vector.extract_strided_slice %461 {offsets = [0, 2], sizes = [4, 1], strides = [1, 1]} : vector<4x4xf32> to vector<4x1xf32>
    %475 = vector.extract_strided_slice %459 {offsets = [2, 0], sizes = [1, 256], strides = [1, 1]} : vector<4x256xf32> to vector<1x256xf32>
    %476 = vector.broadcast %474 : vector<4x1xf32> to vector<4x256xf32>
    %477 = vector.broadcast %475 : vector<1x256xf32> to vector<4x256xf32>
    %478 = arith.mulf %476, %477 : vector<4x256xf32>
    %479 = arith.addf %473, %478 : vector<4x256xf32>
    %480 = vector.extract_strided_slice %461 {offsets = [0, 3], sizes = [4, 1], strides = [1, 1]} : vector<4x4xf32> to vector<4x1xf32>
    %481 = vector.extract_strided_slice %459 {offsets = [3, 0], sizes = [1, 256], strides = [1, 1]} : vector<4x256xf32> to vector<1x256xf32>
    %482 = vector.broadcast %480 : vector<4x1xf32> to vector<4x256xf32>
    %483 = vector.broadcast %481 : vector<1x256xf32> to vector<4x256xf32>
    %484 = arith.mulf %482, %483 : vector<4x256xf32>
    %485 = arith.addf %479, %484 : vector<4x256xf32>
    %486 = vector.extract_strided_slice %295 {offsets = [0, 15], sizes = [4, 241], strides = [1, 1]} : vector<4x256xf32> to vector<4x241xf32>
    %487 = vector.extract_strided_slice %295 {offsets = [0, 0], sizes = [4, 15], strides = [1, 1]} : vector<4x256xf32> to vector<4x15xf32>
    %488 = tpu.concatenate %486, %487 in 1 : vector<4x241xf32>, vector<4x15xf32> -> vector<4x256xf32>
    %c6_74 = arith.constant 6 : index
    %c0_75 = arith.constant 0 : index
    %489 = vector.load %arg6[%c6_74, %c0_75] : memref<9x256xf32, #tpu.memory_space<vmem>>, vector<1x256xf32>
    %490 = vector.broadcast %489 : vector<1x256xf32> to vector<4x256xf32>
    %491 = arith.mulf %488, %490 : vector<4x256xf32>
    %c6_76 = arith.constant 6 : index
    %c0_77 = arith.constant 0 : index
    %c0_78 = arith.constant 0 : index
    %492 = vector.load %arg3[%c6_76, %c0_77, %c0_78] : memref<9x4x4xf32, #tpu.memory_space<vmem>>, vector<1x4x4xf32>
    %493 = vector.shape_cast %492 : vector<1x4x4xf32> to vector<4x4xf32>
    %494 = vector.extract_strided_slice %493 {offsets = [0, 0], sizes = [4, 1], strides = [1, 1]} : vector<4x4xf32> to vector<4x1xf32>
    %495 = vector.extract_strided_slice %491 {offsets = [0, 0], sizes = [1, 256], strides = [1, 1]} : vector<4x256xf32> to vector<1x256xf32>
    %496 = vector.broadcast %494 : vector<4x1xf32> to vector<4x256xf32>
    %497 = vector.broadcast %495 : vector<1x256xf32> to vector<4x256xf32>
    %498 = arith.mulf %496, %497 : vector<4x256xf32>
    %499 = arith.addf %485, %498 : vector<4x256xf32>
    %500 = vector.extract_strided_slice %493 {offsets = [0, 1], sizes = [4, 1], strides = [1, 1]} : vector<4x4xf32> to vector<4x1xf32>
    %501 = vector.extract_strided_slice %491 {offsets = [1, 0], sizes = [1, 256], strides = [1, 1]} : vector<4x256xf32> to vector<1x256xf32>
    %502 = vector.broadcast %500 : vector<4x1xf32> to vector<4x256xf32>
    %503 = vector.broadcast %501 : vector<1x256xf32> to vector<4x256xf32>
    %504 = arith.mulf %502, %503 : vector<4x256xf32>
    %505 = arith.addf %499, %504 : vector<4x256xf32>
    %506 = vector.extract_strided_slice %493 {offsets = [0, 2], sizes = [4, 1], strides = [1, 1]} : vector<4x4xf32> to vector<4x1xf32>
    %507 = vector.extract_strided_slice %491 {offsets = [2, 0], sizes = [1, 256], strides = [1, 1]} : vector<4x256xf32> to vector<1x256xf32>
    %508 = vector.broadcast %506 : vector<4x1xf32> to vector<4x256xf32>
    %509 = vector.broadcast %507 : vector<1x256xf32> to vector<4x256xf32>
    %510 = arith.mulf %508, %509 : vector<4x256xf32>
    %511 = arith.addf %505, %510 : vector<4x256xf32>
    %512 = vector.extract_strided_slice %493 {offsets = [0, 3], sizes = [4, 1], strides = [1, 1]} : vector<4x4xf32> to vector<4x1xf32>
    %513 = vector.extract_strided_slice %491 {offsets = [3, 0], sizes = [1, 256], strides = [1, 1]} : vector<4x256xf32> to vector<1x256xf32>
    %514 = vector.broadcast %512 : vector<4x1xf32> to vector<4x256xf32>
    %515 = vector.broadcast %513 : vector<1x256xf32> to vector<4x256xf32>
    %516 = arith.mulf %514, %515 : vector<4x256xf32>
    %517 = arith.addf %511, %516 : vector<4x256xf32>
    %518 = vector.extract_strided_slice %295 {offsets = [0, 16], sizes = [4, 240], strides = [1, 1]} : vector<4x256xf32> to vector<4x240xf32>
    %519 = vector.extract_strided_slice %295 {offsets = [0, 0], sizes = [4, 16], strides = [1, 1]} : vector<4x256xf32> to vector<4x16xf32>
    %520 = tpu.concatenate %518, %519 in 1 : vector<4x240xf32>, vector<4x16xf32> -> vector<4x256xf32>
    %c7_79 = arith.constant 7 : index
    %c0_80 = arith.constant 0 : index
    %521 = vector.load %arg6[%c7_79, %c0_80] : memref<9x256xf32, #tpu.memory_space<vmem>>, vector<1x256xf32>
    %522 = vector.broadcast %521 : vector<1x256xf32> to vector<4x256xf32>
    %523 = arith.mulf %520, %522 : vector<4x256xf32>
    %c7_81 = arith.constant 7 : index
    %c0_82 = arith.constant 0 : index
    %c0_83 = arith.constant 0 : index
    %524 = vector.load %arg3[%c7_81, %c0_82, %c0_83] : memref<9x4x4xf32, #tpu.memory_space<vmem>>, vector<1x4x4xf32>
    %525 = vector.shape_cast %524 : vector<1x4x4xf32> to vector<4x4xf32>
    %526 = vector.extract_strided_slice %525 {offsets = [0, 0], sizes = [4, 1], strides = [1, 1]} : vector<4x4xf32> to vector<4x1xf32>
    %527 = vector.extract_strided_slice %523 {offsets = [0, 0], sizes = [1, 256], strides = [1, 1]} : vector<4x256xf32> to vector<1x256xf32>
    %528 = vector.broadcast %526 : vector<4x1xf32> to vector<4x256xf32>
    %529 = vector.broadcast %527 : vector<1x256xf32> to vector<4x256xf32>
    %530 = arith.mulf %528, %529 : vector<4x256xf32>
    %531 = arith.addf %517, %530 : vector<4x256xf32>
    %532 = vector.extract_strided_slice %525 {offsets = [0, 1], sizes = [4, 1], strides = [1, 1]} : vector<4x4xf32> to vector<4x1xf32>
    %533 = vector.extract_strided_slice %523 {offsets = [1, 0], sizes = [1, 256], strides = [1, 1]} : vector<4x256xf32> to vector<1x256xf32>
    %534 = vector.broadcast %532 : vector<4x1xf32> to vector<4x256xf32>
    %535 = vector.broadcast %533 : vector<1x256xf32> to vector<4x256xf32>
    %536 = arith.mulf %534, %535 : vector<4x256xf32>
    %537 = arith.addf %531, %536 : vector<4x256xf32>
    %538 = vector.extract_strided_slice %525 {offsets = [0, 2], sizes = [4, 1], strides = [1, 1]} : vector<4x4xf32> to vector<4x1xf32>
    %539 = vector.extract_strided_slice %523 {offsets = [2, 0], sizes = [1, 256], strides = [1, 1]} : vector<4x256xf32> to vector<1x256xf32>
    %540 = vector.broadcast %538 : vector<4x1xf32> to vector<4x256xf32>
    %541 = vector.broadcast %539 : vector<1x256xf32> to vector<4x256xf32>
    %542 = arith.mulf %540, %541 : vector<4x256xf32>
    %543 = arith.addf %537, %542 : vector<4x256xf32>
    %544 = vector.extract_strided_slice %525 {offsets = [0, 3], sizes = [4, 1], strides = [1, 1]} : vector<4x4xf32> to vector<4x1xf32>
    %545 = vector.extract_strided_slice %523 {offsets = [3, 0], sizes = [1, 256], strides = [1, 1]} : vector<4x256xf32> to vector<1x256xf32>
    %546 = vector.broadcast %544 : vector<4x1xf32> to vector<4x256xf32>
    %547 = vector.broadcast %545 : vector<1x256xf32> to vector<4x256xf32>
    %548 = arith.mulf %546, %547 : vector<4x256xf32>
    %549 = arith.addf %543, %548 : vector<4x256xf32>
    %550 = vector.extract_strided_slice %295 {offsets = [0, 17], sizes = [4, 239], strides = [1, 1]} : vector<4x256xf32> to vector<4x239xf32>
    %551 = vector.extract_strided_slice %295 {offsets = [0, 0], sizes = [4, 17], strides = [1, 1]} : vector<4x256xf32> to vector<4x17xf32>
    %552 = tpu.concatenate %550, %551 in 1 : vector<4x239xf32>, vector<4x17xf32> -> vector<4x256xf32>
    %c8_84 = arith.constant 8 : index
    %c0_85 = arith.constant 0 : index
    %553 = vector.load %arg6[%c8_84, %c0_85] : memref<9x256xf32, #tpu.memory_space<vmem>>, vector<1x256xf32>
    %554 = vector.broadcast %553 : vector<1x256xf32> to vector<4x256xf32>
    %555 = arith.mulf %552, %554 : vector<4x256xf32>
    %c8_86 = arith.constant 8 : index
    %c0_87 = arith.constant 0 : index
    %c0_88 = arith.constant 0 : index
    %556 = vector.load %arg3[%c8_86, %c0_87, %c0_88] : memref<9x4x4xf32, #tpu.memory_space<vmem>>, vector<1x4x4xf32>
    %557 = vector.shape_cast %556 : vector<1x4x4xf32> to vector<4x4xf32>
    %558 = vector.extract_strided_slice %557 {offsets = [0, 0], sizes = [4, 1], strides = [1, 1]} : vector<4x4xf32> to vector<4x1xf32>
    %559 = vector.extract_strided_slice %555 {offsets = [0, 0], sizes = [1, 256], strides = [1, 1]} : vector<4x256xf32> to vector<1x256xf32>
    %560 = vector.broadcast %558 : vector<4x1xf32> to vector<4x256xf32>
    %561 = vector.broadcast %559 : vector<1x256xf32> to vector<4x256xf32>
    %562 = arith.mulf %560, %561 : vector<4x256xf32>
    %563 = arith.addf %549, %562 : vector<4x256xf32>
    %564 = vector.extract_strided_slice %557 {offsets = [0, 1], sizes = [4, 1], strides = [1, 1]} : vector<4x4xf32> to vector<4x1xf32>
    %565 = vector.extract_strided_slice %555 {offsets = [1, 0], sizes = [1, 256], strides = [1, 1]} : vector<4x256xf32> to vector<1x256xf32>
    %566 = vector.broadcast %564 : vector<4x1xf32> to vector<4x256xf32>
    %567 = vector.broadcast %565 : vector<1x256xf32> to vector<4x256xf32>
    %568 = arith.mulf %566, %567 : vector<4x256xf32>
    %569 = arith.addf %563, %568 : vector<4x256xf32>
    %570 = vector.extract_strided_slice %557 {offsets = [0, 2], sizes = [4, 1], strides = [1, 1]} : vector<4x4xf32> to vector<4x1xf32>
    %571 = vector.extract_strided_slice %555 {offsets = [2, 0], sizes = [1, 256], strides = [1, 1]} : vector<4x256xf32> to vector<1x256xf32>
    %572 = vector.broadcast %570 : vector<4x1xf32> to vector<4x256xf32>
    %573 = vector.broadcast %571 : vector<1x256xf32> to vector<4x256xf32>
    %574 = arith.mulf %572, %573 : vector<4x256xf32>
    %575 = arith.addf %569, %574 : vector<4x256xf32>
    %576 = vector.extract_strided_slice %557 {offsets = [0, 3], sizes = [4, 1], strides = [1, 1]} : vector<4x4xf32> to vector<4x1xf32>
    %577 = vector.extract_strided_slice %555 {offsets = [3, 0], sizes = [1, 256], strides = [1, 1]} : vector<4x256xf32> to vector<1x256xf32>
    %578 = vector.broadcast %576 : vector<4x1xf32> to vector<4x256xf32>
    %579 = vector.broadcast %577 : vector<1x256xf32> to vector<4x256xf32>
    %580 = arith.mulf %578, %579 : vector<4x256xf32>
    %581 = arith.addf %575, %580 : vector<4x256xf32>
    %c0_89 = arith.constant 0 : index
    %c0_90 = arith.constant 0 : index
    %582 = vector.load %arg5[%c0_89, %c0_90] : memref<4x1xf32, #tpu.memory_space<vmem>>, vector<4x1xf32>
    %583 = vector.broadcast %582 : vector<4x1xf32> to vector<4x256xf32>
    %584 = arith.addf %581, %583 : vector<4x256xf32>
    %c0_91 = arith.constant 0 : index
    %c0_92 = arith.constant 0 : index
    %c0_93 = arith.constant 0 : index
    %585 = vector.load %arg1[%c0_91, %c0_92, %c0_93] : memref<1x4x256xf32, #tpu.memory_space<vmem>>, vector<1x4x256xf32>
    %586 = vector.shape_cast %585 : vector<1x4x256xf32> to vector<4x256xf32>
    %587 = arith.addf %584, %586 : vector<4x256xf32>
    %cst_94 = arith.constant 0.000000e+00 : f32
    %588 = vector.broadcast %cst_94 : f32 to vector<4x256xf32>
    %589 = arith.cmpf oge, %587, %588 : vector<4x256xf32>
    %cst_95 = arith.constant 2.000000e-01 : f32
    %590 = vector.broadcast %cst_95 : f32 to vector<4x256xf32>
    %591 = arith.mulf %590, %587 : vector<4x256xf32>
    %592 = arith.select %589, %587, %591 : vector<4x256xi1>, vector<4x256xf32>
    %c0_96 = arith.constant 0 : index
    %c0_97 = arith.constant 0 : index
    %c0_98 = arith.constant 0 : index
    %593 = vector.load %arg7[%c0_96, %c0_97, %c0_98] : memref<1x4x256xf32, #tpu.memory_space<vmem>>, vector<1x4x256xf32>
    %594 = vector.shape_cast %593 : vector<1x4x256xf32> to vector<4x256xf32>
    %595 = vector.shape_cast %592 : vector<4x256xf32> to vector<1x4x256xf32>
    tpu.vector_store %arg7[%c0_96, %c0_97, %c0_98], %595 {strides = array<i32>} : memref<1x4x256xf32, #tpu.memory_space<vmem>>, vector<1x4x256xf32>,
    return
  }
  func.func @transform_0(%arg0: i32) -> (i32, i32, i32) {
    %c0_i32 = arith.constant 0 : i32
    %c0_i32_0 = arith.constant 0 : i32
    %c0_i32_1 = arith.constant 0 : i32
    return %arg0, %c0_i32, %c0_i32_0 : i32, i32, i32
  }
  func.func @transform_1(%arg0: i32) -> (i32, i32, i32) {
    %c0_i32 = arith.constant 0 : i32
    %c0_i32_0 = arith.constant 0 : i32
    %c0_i32_1 = arith.constant 0 : i32
    %c0_i32_2 = arith.constant 0 : i32
    return %c0_i32, %c0_i32_0, %c0_i32_1 : i32, i32, i32
  }
  func.func @transform_2(%arg0: i32) -> (i32, i32, i32) {
    %c0_i32 = arith.constant 0 : i32
    %c0_i32_0 = arith.constant 0 : i32
    %c0_i32_1 = arith.constant 0 : i32
    %c0_i32_2 = arith.constant 0 : i32
    return %c0_i32, %c0_i32_0, %c0_i32_1 : i32, i32, i32
  }
  func.func @transform_3(%arg0: i32) -> (i32, i32) {
    %c0_i32 = arith.constant 0 : i32
    %c0_i32_0 = arith.constant 0 : i32
    %c0_i32_1 = arith.constant 0 : i32
    return %c0_i32, %c0_i32_0 : i32, i32
  }
  func.func @transform_4(%arg0: i32) -> (i32, i32) {
    %c0_i32 = arith.constant 0 : i32
    %c0_i32_0 = arith.constant 0 : i32
    %c0_i32_1 = arith.constant 0 : i32
    return %c0_i32, %c0_i32_0 : i32, i32
  }
  func.func @transform_5(%arg0: i32) -> (i32, i32) {
    %c0_i32 = arith.constant 0 : i32
    %c0_i32_0 = arith.constant 0 : i32
    %c0_i32_1 = arith.constant 0 : i32
    return %c0_i32, %c0_i32_0 : i32, i32
  }
  func.func @transform_6(%arg0: i32) -> (i32, i32, i32) {
    %c0_i32 = arith.constant 0 : i32
    %c0_i32_0 = arith.constant 0 : i32
    %c0_i32_1 = arith.constant 0 : i32
    return %arg0, %c0_i32, %c0_i32_0 : i32, i32, i32
  }
}

</mosaic_0001>

<llo_original>
// kernel: tpu_custom_call.1
$region0: #{tpu_custom_call.1}
  #allocation0 [shape = 'u32[]', space=smem, size = 0x4, offset = 0x4, fixed_abs, tag = 'smem constant byte address 0x4 - core index']
  #allocation1 [shape = 'u32[144,128]{1,0:T(1,128)}', space=vmem, size = 0x12000, scoped, tag = 'internal scratch']
  %s0 = inlined_call_operand.vmem [shape: f32[2,4,256], index: 0, kind: input, shape index: {}]
  %s1 = inlined_call_operand.vmem [shape: f32[9,4,4], index: 1, kind: input, shape index: {}]
  %s2 = inlined_call_operand.vmem [shape: f32[9,4,4], index: 2, kind: input, shape index: {}]
  %s3 = inlined_call_operand.vmem [shape: f32[4,1], index: 3, kind: input, shape index: {}]
  %s4 = inlined_call_operand.vmem [shape: f32[4,1], index: 4, kind: input, shape index: {}]
  %s5 = inlined_call_operand.vmem [shape: f32[9,256], index: 5, kind: input, shape index: {}]
  %s6 = inlined_call_operand.hbm [shape: f32[2,4,256], index: 6, kind: output, shape index: {}]
  %s7 = sld [smem:[#allocation0]]
  $region57: #{tpu_custom_call.1} parent=0
    _
  %s9 = ssub.s32 1, %s7
  %s10 = scalar_select 0, %s9, %s7
  $region1: #{tpu_custom_call.1} parent=0
    #allocation2 [shape = 'u8[8192]{0}', space=vmem, size = 0x2000, scoped, tag = 'output window, operand 0']
    #allocation3 [shape = 's32[2]{0}', space=sflag, size = 0x8, scoped, tag = 'scoped memory for tpu_custom_call.1']
    %11 = vsyncpa [#allocation3], 0
    %s12 = scalar_lea.sflag [#allocation3], 1
    %13 = vsyncpa %s12, 0
    loop: start=0, step=1, limit=4
    $region2: #{tpu_custom_call.1} parent=1 // loop_pre_header
      _
    $region3: #{tpu_custom_call.1} parent=1 // loop_header
      %s15 = sphi 0, %s19
      %p16 = scmp.ge.s32.totalorder %s15, 4
      %s25 = sphi 0, %s27
      %s28 = sphi 0, %s25
      %s29 = sphi 0, %s28
      %s45 = sphi 0, %s29
      %s49 = sphi 0, %s49
      %s51 = sphi 0, %s49
      %s52 = sphi 0, %s51
      %s66 = sphi 0, %s52
      %s70 = sphi 0, %s70
      %s72 = sphi 0, %s70
      %s73 = sphi 0, %s72
      %s87 = sphi 0, %s73
      %s91 = sphi 0, %s91
      %s93 = sphi 0, %s91
      %s94 = sphi 0, %s93
      %s108 = sphi 0, %s94
      %s112 = sphi 0, %s112
      %s114 = sphi 0, %s112
      %s115 = sphi 0, %s114
      %s129 = sphi 0, %s115
      %s133 = sphi 0, %s133
      %s135 = sphi 0, %s133
      %s136 = sphi 0, %s135
      %s150 = sphi 0, %s136
      %s156 = sphi 0, %s158
      %s159 = sphi 0, %s156
      %s160 = sphi 0, %s159
      %s176 = sphi 0, %s160
    $region4: #{tpu_custom_call.1} parent=1 // loop_header_branch
      %18 = sbr.rel (%p16) target = $region8
    $region5: #{tpu_custom_call.1} parent=1 // loop_body
      %s20 = ssub.s32 %s15, 1
      %s21 = ssub.s32 %s15, 2
      %s22 = sadd.s32 %s15, 1
      %s23 = ssub.s32 %s15, %s22
      %p24 = scmp.eq.s32.totalorder %s23, 0
      %s26 = sadd.s32 %s25, 1
      %s27 = scalar_select %p24, %s25, %s26
      %p30 = pneg %p24
      %p31 = scmp.eq.s32.totalorder %s15, 1
      %p32 = por %p30, %p31
      %p33 = scmp.ne.s32.totalorder %s25, %s28
      %p34 = scmp.eq.s32.totalorder %s15, 0
      %p35 = por %p33, %p34
      %p36 = scmp.ne.s32.totalorder %s25, %s28
      %p37 = scmp.eq.s32.totalorder %s20, 1
      %p38 = por %p36, %p37
      %p39 = scmp.ne.s32.totalorder %s28, %s29
      %p40 = scmp.eq.s32.totalorder %s20, 0
      %p41 = por %p39, %p40
      %p42 = scmp.ne.s32.totalorder %s28, %s29
      %p43 = scmp.eq.s32.totalorder %s21, 1
      %p44 = por %p42, %p43
      %p46 = scmp.ne.s32.totalorder %s29, %s45
      %p47 = scmp.eq.s32.totalorder %s21, 0
      %p48 = por %p46, %p47
      %s50 = sadd.s32 %s49, 1
      %p53 = scmp.eq.s32.totalorder %s15, 1
      %p54 = scmp.ne.s32.totalorder %s49, %s51
      %p55 = scmp.eq.s32.totalorder %s15, 0
      %p56 = por %p54, %p55
      %p57 = scmp.ne.s32.totalorder %s49, %s51
      %p58 = scmp.eq.s32.totalorder %s20, 1
      %p59 = por %p57, %p58
      %p60 = scmp.ne.s32.totalorder %s51, %s52
      %p61 = scmp.eq.s32.totalorder %s20, 0
      %p62 = por %p60, %p61
      %p63 = scmp.ne.s32.totalorder %s51, %s52
      %p64 = scmp.eq.s32.totalorder %s21, 1
      %p65 = por %p63, %p64
      %p67 = scmp.ne.s32.totalorder %s52, %s66
      %p68 = scmp.eq.s32.totalorder %s21, 0
      %p69 = por %p67, %p68
      %s71 = sadd.s32 %s70, 1
      %p74 = scmp.eq.s32.totalorder %s15, 1
      %p75 = scmp.ne.s32.totalorder %s70, %s72
      %p76 = scmp.eq.s32.totalorder %s15, 0
      %p77 = por %p75, %p76
      %p78 = scmp.ne.s32.totalorder %s70, %s72
      %p79 = scmp.eq.s32.totalorder %s20, 1
      %p80 = por %p78, %p79
      %p81 = scmp.ne.s32.totalorder %s72, %s73
      %p82 = scmp.eq.s32.totalorder %s20, 0
      %p83 = por %p81, %p82
      %p84 = scmp.ne.s32.totalorder %s72, %s73
      %p85 = scmp.eq.s32.totalorder %s21, 1
      %p86 = por %p84, %p85
      %p88 = scmp.ne.s32.totalorder %s73, %s87
      %p89 = scmp.eq.s32.totalorder %s21, 0
      %p90 = por %p88, %p89
      %s92 = sadd.s32 %s91, 1
      %p95 = scmp.eq.s32.totalorder %s15, 1
      %p96 = scmp.ne.s32.totalorder %s91, %s93
      %p97 = scmp.eq.s32.totalorder %s15, 0
      %p98 = por %p96, %p97
      %p99 = scmp.ne.s32.totalorder %s91, %s93
      %p100 = scmp.eq.s32.totalorder %s20, 1
      %p101 = por %p99, %p100
      %p102 = scmp.ne.s32.totalorder %s93, %s94
      %p103 = scmp.eq.s32.totalorder %s20, 0
      %p104 = por %p102, %p103
      %p105 = scmp.ne.s32.totalorder %s93, %s94
      %p106 = scmp.eq.s32.totalorder %s21, 1
      %p107 = por %p105, %p106
      %p109 = scmp.ne.s32.totalorder %s94, %s108
      %p110 = scmp.eq.s32.totalorder %s21, 0
      %p111 = por %p109, %p110
      %s113 = sadd.s32 %s112, 1
      %p116 = scmp.eq.s32.totalorder %s15, 1
      %p117 = scmp.ne.s32.totalorder %s112, %s114
      %p118 = scmp.eq.s32.totalorder %s15, 0
      %p119 = por %p117, %p118
      %p120 = scmp.ne.s32.totalorder %s112, %s114
      %p121 = scmp.eq.s32.totalorder %s20, 1
      %p122 = por %p120, %p121
      %p123 = scmp.ne.s32.totalorder %s114, %s115
      %p124 = scmp.eq.s32.totalorder %s20, 0
      %p125 = por %p123, %p124
      %p126 = scmp.ne.s32.totalorder %s114, %s115
      %p127 = scmp.eq.s32.totalorder %s21, 1
      %p128 = por %p126, %p127
      %p130 = scmp.ne.s32.totalorder %s115, %s129
      %p131 = scmp.eq.s32.totalorder %s21, 0
      %p132 = por %p130, %p131
      %s134 = sadd.s32 %s133, 1
      %p137 = scmp.eq.s32.totalorder %s15, 1
      %p138 = scmp.ne.s32.totalorder %s133, %s135
      %p139 = scmp.eq.s32.totalorder %s15, 0
      %p140 = por %p138, %p139
      %p141 = scmp.ne.s32.totalorder %s133, %s135
      %p142 = scmp.eq.s32.totalorder %s20, 1
      %p143 = por %p141, %p142
      %p144 = scmp.ne.s32.totalorder %s135, %s136
      %p145 = scmp.eq.s32.totalorder %s20, 0
      %p146 = por %p144, %p145
      %p147 = scmp.ne.s32.totalorder %s135, %s136
      %p148 = scmp.eq.s32.totalorder %s21, 1
      %p149 = por %p147, %p148
      %p151 = scmp.ne.s32.totalorder %s136, %s150
      %p152 = scmp.eq.s32.totalorder %s21, 0
      %p153 = por %p151, %p152
      %s154 = ssub.s32 %s15, %s22
      %p155 = scmp.eq.s32.totalorder %s154, 0
      %s157 = sadd.s32 %s156, 1
      %s158 = scalar_select %p155, %s156, %s157
      %p161 = pneg %p155
      %p162 = scmp.eq.s32.totalorder %s15, 1
      %p163 = por %p161, %p162
      %p164 = scmp.ne.s32.totalorder %s156, %s159
      %p165 = scmp.eq.s32.totalorder %s15, 0
      %p166 = por %p164, %p165
      %p167 = scmp.ne.s32.totalorder %s156, %s159
      %p168 = scmp.eq.s32.totalorder %s20, 1
      %p169 = por %p167, %p168
      %p170 = scmp.ne.s32.totalorder %s159, %s160
      %p171 = scmp.eq.s32.totalorder %s20, 0
      %p172 = por %p170, %p171
      %p173 = scmp.ne.s32.totalorder %s159, %s160
      %p174 = scmp.eq.s32.totalorder %s21, 1
      %p175 = por %p173, %p174
      %p177 = scmp.ne.s32.totalorder %s160, %s176
      %p178 = scmp.eq.s32.totalorder %s21, 0
      %p179 = por %p177, %p178
      %p180 = scmp.le.s32.totalorder 1, %s15
      %p181 = scmp.lt.s32.totalorder %s15, 3
      %p182 = pnand %p180, %p181
      %p183 = pneg %p182
      // Predicated region
      $region9: #{tpu_custom_call.1} parent=5 // pred_check
        _
      $region10: #{tpu_custom_call.1} parent=5 // pred_check_branch
        %185 = sbr.rel (%p182) target = $region12
      $region11: #{tpu_custom_call.1} parent=5 // pred_region
        %s186 = ssub.s32 %s15, 1
        // Predicated region
        $region13: #{tpu_custom_call.1} parent=11 // pred_check
          %p187 = pneg %p62
        $region14: #{tpu_custom_call.1} parent=11 // pred_check_branch
          %189 = sbr.rel (%p187) target = $region16
        $region15: #{tpu_custom_call.1} parent=11 // pred_region
          _
        $region16: #{tpu_custom_call.1} parent=11 // pred_fallthru
          _
        // Predicated region
        $region17: #{tpu_custom_call.1} parent=11 // pred_check
          %p190 = pneg %p83
        $region18: #{tpu_custom_call.1} parent=11 // pred_check_branch
          %192 = sbr.rel (%p190) target = $region20
        $region19: #{tpu_custom_call.1} parent=11 // pred_region
          _
        $region20: #{tpu_custom_call.1} parent=11 // pred_fallthru
          _
        // Predicated region
        $region21: #{tpu_custom_call.1} parent=11 // pred_check
          %p193 = pneg %p104
        $region22: #{tpu_custom_call.1} parent=11 // pred_check_branch
          %195 = sbr.rel (%p193) target = $region24
        $region23: #{tpu_custom_call.1} parent=11 // pred_region
          _
        $region24: #{tpu_custom_call.1} parent=11 // pred_fallthru
          _
        // Predicated region
        $region25: #{tpu_custom_call.1} parent=11 // pred_check
          %p196 = pneg %p125
        $region26: #{tpu_custom_call.1} parent=11 // pred_check_branch
          %198 = sbr.rel (%p196) target = $region28
        $region27: #{tpu_custom_call.1} parent=11 // pred_region
          _
        $region28: #{tpu_custom_call.1} parent=11 // pred_fallthru
          _
        // Predicated region
        $region29: #{tpu_custom_call.1} parent=11 // pred_check
          %p199 = pneg %p146
        $region30: #{tpu_custom_call.1} parent=11 // pred_check_branch
          %201 = sbr.rel (%p199) target = $region32
        $region31: #{tpu_custom_call.1} parent=11 // pred_region
          _
        $region32: #{tpu_custom_call.1} parent=11 // pred_fallthru
          _
      $region12: #{tpu_custom_call.1} parent=5 // pred_fallthru
        _
      %p202 = scmp.lt.s32.totalorder %s15, 2
      // Predicated region
      $region33: #{tpu_custom_call.1} parent=5 // pred_check
        %p203 = pneg %p202
      $region34: #{tpu_custom_call.1} parent=5 // pred_check_branch
        %205 = sbr.rel (%p203) target = $region36
      $region35: #{tpu_custom_call.1} parent=5 // pred_region
        // Predicated region
        $region37: #{tpu_custom_call.1} parent=35 // pred_check
          %p206 = pneg %p35
        $region38: #{tpu_custom_call.1} parent=35 // pred_check_branch
          %208 = sbr.rel (%p206) target = $region40
        $region39: #{tpu_custom_call.1} parent=35 // pred_region
          %p209 = scmp.lt.s32.totalorder %s15, 1
          %s210 = scalar_select %p209, %s15, 1
          %s211 = smul.addr %s210, 2
          %s212 = smul.addr %s211, 4
          %s213 = scalar_lea.vmem %s0, %s212
        $region40: #{tpu_custom_call.1} parent=35 // pred_fallthru
          _
      $region36: #{tpu_custom_call.1} parent=5 // pred_fallthru
        _
      %p214 = scmp.le.s32.totalorder 1, %s15
      %p215 = scmp.lt.s32.totalorder %s15, 3
      %p216 = pnand %p214, %p215
      %p217 = pneg %p216
      // Predicated region
      $region41: #{tpu_custom_call.1} parent=5 // pred_check
        _
      $region42: #{tpu_custom_call.1} parent=5 // pred_check_branch
        %219 = sbr.rel (%p216) target = $region44
      $region43: #{tpu_custom_call.1} parent=5 // pred_region
        %s220 = ssub.s32 %s15, 1
        %p221 = scmp.lt.s32.totalorder %s20, 1
        %s222 = scalar_select %p221, %s20, 1
        %s223 = smul.addr %s222, 2
        %s224 = smul.addr %s223, 4
        %s225 = scalar_lea.vmem %s0, %s224
        %p226 = pneg %p41
        %p227 = pneg %p38
        %p228 = pneg %p62
        %p229 = pneg %p59
        %p230 = pneg %p83
        %p231 = pneg %p80
        %p232 = pneg %p104
        %p233 = pneg %p101
        %p234 = pneg %p125
        %p235 = pneg %p122
        %p236 = pneg %p146
        %p237 = pneg %p143
        %p238 = pneg %p172
        %p239 = pneg %p169
        %s240 = sand.u32 %s159, 1
        %s241 = scalar_lea.sflag [#allocation3], %s240
        %s242 = sand.u32 %s159, 1
        %s243 = smul.addr %s242, 8
        %s244 = scalar_lea.vmem [#allocation2], %s243
        %p245 = scmp.lt.s32.totalorder %s20, 1
        %s246 = scalar_select %p245, %s20, 1
        %s247 = smul.addr %s246, 2
        %s248 = smul.addr %s247, 4
        %s249 = scalar_lea.vmem %s0, %s248
        %v250 = vld [vmem:[%s249] sm:$0xff]
        %v252 = vcombine.high %v250, %v250
        %253 = vrot.lane.b32.xlu0 %v252, 17
        %v254 = vpop.permute.xlu0 %253
        %256 = vrot.lane.b32.xlu0 %v250, 17
        %v257 = vpop.permute.xlu0 %256
        %vm258 = vcmask 138240
        %v259 = vsel %vm258, %v257, %v254
        %v262 = vsel %vm258, %v254, %v257
        %v263 = vld [vmem:[%s5] ss:$8 sm:$0x3]
        %v265 = vlaneseq
        %v266 = vshrl.u32 %v265, 7
        %v267 = vsub.s32 0, %v266
        %v268 = vrot.slane %v263, %v267
        %v269 = vlaneseq
        %v270 = vshrl.u32 %v269, 7
        %v271 = vsub.s32 1, %v270
        %v272 = vrot.slane %v263, %v271
        %v275 = vmul.f32 %v262, %v268
        %v276 = vmul.f32 %v259, %v272
        %v277 = vld [vmem:[%s1] sm:$0xf]
        %279 = vset.pattern.permute.xlu0 0
        %280 = vperm.xlu0 %279, %v277
        %v281 = vpop.permute.xlu0 %280
        %v283 = vlaneseq
        %v284 = vshrl.u32 %v283, 7
        %v285 = vsub.s32 0, %v284
        %v286 = vrot.slane %v275, %v285
        %v287 = vlaneseq
        %v288 = vshrl.u32 %v287, 7
        %v289 = vsub.s32 0, %v288
        %v290 = vrot.slane %v276, %v289
        %v291 = vmul.f32 %v281, %v286
        %v292 = vmul.f32 %v281, %v290
        %v293 = vadd.f32 %v291, 0.0
        %v294 = vadd.f32 %v292, 0.0
        %295 = vset.pattern.permute.xlu0 1
        %296 = vperm.xlu0 %295, %v277
        %v297 = vpop.permute.xlu0 %296
        %v299 = vlaneseq
        %v300 = vshrl.u32 %v299, 7
        %v301 = vsub.s32 1, %v300
        %v302 = vrot.slane %v275, %v301
        %v303 = vlaneseq
        %v304 = vshrl.u32 %v303, 7
        %v305 = vsub.s32 1, %v304
        %v306 = vrot.slane %v276, %v305
        %v307 = vmul.f32 %v297, %v302
        %v308 = vmul.f32 %v297, %v306
        %v309 = vadd.f32 %v293, %v307
        %v310 = vadd.f32 %v294, %v308
        %311 = vset.pattern.permute.xlu0 2
        %312 = vperm.xlu0 %311, %v277
        %v313 = vpop.permute.xlu0 %312
        %v315 = vlaneseq
        %v316 = vshrl.u32 %v315, 7
        %v317 = vsub.s32 2, %v316
        %v318 = vrot.slane %v275, %v317
        %v319 = vlaneseq
        %v320 = vshrl.u32 %v319, 7
        %v321 = vsub.s32 2, %v320
        %v322 = vrot.slane %v276, %v321
        %v323 = vmul.f32 %v313, %v318
        %v324 = vmul.f32 %v313, %v322
        %v325 = vadd.f32 %v309, %v323
        %v326 = vadd.f32 %v310, %v324
        %327 = vset.pattern.permute.xlu0 3
        %328 = vperm.xlu0 %327, %v277
        %v329 = vpop.permute.xlu0 %328
        %v331 = vlaneseq
        %v332 = vshrl.u32 %v331, 7
        %v333 = vsub.s32 3, %v332
        %v334 = vrot.slane %v275, %v333
        %v335 = vlaneseq
        %v336 = vshrl.u32 %v335, 7
        %v337 = vsub.s32 3, %v336
        %v338 = vrot.slane %v276, %v337
        %v339 = vmul.f32 %v329, %v334
        %v340 = vmul.f32 %v329, %v338
        %v341 = vadd.f32 %v325, %v339
        %v342 = vadd.f32 %v326, %v340
        %343 = vrot.lane.b32.xlu0 %v252, 16
        %v344 = vpop.permute.xlu0 %343
        %346 = vrot.lane.b32.xlu0 %v250, 16
        %v347 = vpop.permute.xlu0 %346
        %vm348 = vcmask 130048
        %v349 = vsel %vm348, %v347, %v344
        %v352 = vsel %vm348, %v344, %v347
        %s353 = scalar_lea.vmem %s5, 1
        %v354 = vld [vmem:[%s353] ss:$8 sm:$0x3]
        %v356 = vlaneseq
        %v357 = vshrl.u32 %v356, 7
        %v358 = vsub.s32 0, %v357
        %v359 = vrot.slane %v354, %v358
        %v360 = vlaneseq
        %v361 = vshrl.u32 %v360, 7
        %v362 = vsub.s32 1, %v361
        %v363 = vrot.slane %v354, %v362
        %v366 = vmul.f32 %v352, %v359
        %v367 = vmul.f32 %v349, %v363
        %s368 = scalar_lea.vmem %s1, 4
        %v369 = vld [vmem:[%s368] sm:$0xf]
        %371 = vset.pattern.permute.xlu0 0
        %372 = vperm.xlu0 %371, %v369
        %v373 = vpop.permute.xlu0 %372
        %v375 = vlaneseq
        %v376 = vshrl.u32 %v375, 7
        %v377 = vsub.s32 0, %v376
        %v378 = vrot.slane %v366, %v377
        %v379 = vlaneseq
        %v380 = vshrl.u32 %v379, 7
        %v381 = vsub.s32 0, %v380
        %v382 = vrot.slane %v367, %v381
        %v383 = vmul.f32 %v373, %v378
        %v384 = vmul.f32 %v373, %v382
        %v385 = vadd.f32 %v341, %v383
        %v386 = vadd.f32 %v342, %v384
        %387 = vset.pattern.permute.xlu0 1
        %388 = vperm.xlu0 %387, %v369
        %v389 = vpop.permute.xlu0 %388
        %v391 = vlaneseq
        %v392 = vshrl.u32 %v391, 7
        %v393 = vsub.s32 1, %v392
        %v394 = vrot.slane %v366, %v393
        %v395 = vlaneseq
        %v396 = vshrl.u32 %v395, 7
        %v397 = vsub.s32 1, %v396
        %v398 = vrot.slane %v367, %v397
        %v399 = vmul.f32 %v389, %v394
        %v400 = vmul.f32 %v389, %v398
        %v401 = vadd.f32 %v385, %v399
        %v402 = vadd.f32 %v386, %v400
        %403 = vset.pattern.permute.xlu0 2
        %404 = vperm.xlu0 %403, %v369
        %v405 = vpop.permute.xlu0 %404
        %v407 = vlaneseq
        %v408 = vshrl.u32 %v407, 7
        %v409 = vsub.s32 2, %v408
        %v410 = vrot.slane %v366, %v409
        %v411 = vlaneseq
        %v412 = vshrl.u32 %v411, 7
        %v413 = vsub.s32 2, %v412
        %v414 = vrot.slane %v367, %v413
        %v415 = vmul.f32 %v405, %v410
        %v416 = vmul.f32 %v405, %v414
        %v417 = vadd.f32 %v401, %v415
        %v418 = vadd.f32 %v402, %v416
        %419 = vset.pattern.permute.xlu0 3
        %420 = vperm.xlu0 %419, %v369
        %v421 = vpop.permute.xlu0 %420
        %v423 = vlaneseq
        %v424 = vshrl.u32 %v423, 7
        %v425 = vsub.s32 3, %v424
        %v426 = vrot.slane %v366, %v425
        %v427 = vlaneseq
        %v428 = vshrl.u32 %v427, 7
        %v429 = vsub.s32 3, %v428
        %v430 = vrot.slane %v367, %v429
        %v431 = vmul.f32 %v421, %v426
        %v432 = vmul.f32 %v421, %v430
        %v433 = vadd.f32 %v417, %v431
        %v434 = vadd.f32 %v418, %v432
        %435 = vrot.lane.b32.xlu0 %v252, 15
        %v436 = vpop.permute.xlu0 %435
        %438 = vrot.lane.b32.xlu0 %v250, 15
        %v439 = vpop.permute.xlu0 %438
        %vm440 = vcmask 121856
        %v441 = vsel %vm440, %v439, %v436
        %v444 = vsel %vm440, %v436, %v439
        %s445 = scalar_lea.vmem %s5, 2
        %v446 = vld [vmem:[%s445] ss:$8 sm:$0x3]
        %v448 = vlaneseq
        %v449 = vshrl.u32 %v448, 7
        %v450 = vsub.s32 0, %v449
        %v451 = vrot.slane %v446, %v450
        %v452 = vlaneseq
        %v453 = vshrl.u32 %v452, 7
        %v454 = vsub.s32 1, %v453
        %v455 = vrot.slane %v446, %v454
        %v458 = vmul.f32 %v444, %v451
        %v459 = vmul.f32 %v441, %v455
        %s460 = scalar_lea.vmem %s1, 8
        %v461 = vld [vmem:[%s460] sm:$0xf]
        %463 = vset.pattern.permute.xlu0 0
        %464 = vperm.xlu0 %463, %v461
        %v465 = vpop.permute.xlu0 %464
        %v467 = vlaneseq
        %v468 = vshrl.u32 %v467, 7
        %v469 = vsub.s32 0, %v468
        %v470 = vrot.slane %v458, %v469
        %v471 = vlaneseq
        %v472 = vshrl.u32 %v471, 7
        %v473 = vsub.s32 0, %v472
        %v474 = vrot.slane %v459, %v473
        %v475 = vmul.f32 %v465, %v470
        %v476 = vmul.f32 %v465, %v474
        %v477 = vadd.f32 %v433, %v475
        %v478 = vadd.f32 %v434, %v476
        %479 = vset.pattern.permute.xlu0 1
        %480 = vperm.xlu0 %479, %v461
        %v481 = vpop.permute.xlu0 %480
        %v483 = vlaneseq
        %v484 = vshrl.u32 %v483, 7
        %v485 = vsub.s32 1, %v484
        %v486 = vrot.slane %v458, %v485
        %v487 = vlaneseq
        %v488 = vshrl.u32 %v487, 7
        %v489 = vsub.s32 1, %v488
        %v490 = vrot.slane %v459, %v489
        %v491 = vmul.f32 %v481, %v486
        %v492 = vmul.f32 %v481, %v490
        %v493 = vadd.f32 %v477, %v491
        %v494 = vadd.f32 %v478, %v492
        %495 = vset.pattern.permute.xlu0 2
        %496 = vperm.xlu0 %495, %v461
        %v497 = vpop.permute.xlu0 %496
        %v499 = vlaneseq
        %v500 = vshrl.u32 %v499, 7
        %v501 = vsub.s32 2, %v500
        %v502 = vrot.slane %v458, %v501
        %v503 = vlaneseq
        %v504 = vshrl.u32 %v503, 7
        %v505 = vsub.s32 2, %v504
        %v506 = vrot.slane %v459, %v505
        %v507 = vmul.f32 %v497, %v502
        %v508 = vmul.f32 %v497, %v506
        %v509 = vadd.f32 %v493, %v507
        %v510 = vadd.f32 %v494, %v508
        %511 = vset.pattern.permute.xlu0 3
        %512 = vperm.xlu0 %511, %v461
        %v513 = vpop.permute.xlu0 %512
        %v515 = vlaneseq
        %v516 = vshrl.u32 %v515, 7
        %v517 = vsub.s32 3, %v516
        %v518 = vrot.slane %v458, %v517
        %v519 = vlaneseq
        %v520 = vshrl.u32 %v519, 7
        %v521 = vsub.s32 3, %v520
        %v522 = vrot.slane %v459, %v521
        %v523 = vmul.f32 %v513, %v518
        %v524 = vmul.f32 %v513, %v522
        %v525 = vadd.f32 %v509, %v523
        %v526 = vadd.f32 %v510, %v524
        %527 = vrot.lane.b32.xlu0 %v252, 1
        %v528 = vpop.permute.xlu0 %527
        %530 = vrot.lane.b32.xlu0 %v250, 1
        %v531 = vpop.permute.xlu0 %530
        %vm532 = vcmask 7168
        %v533 = vsel %vm532, %v531, %v528
        %v536 = vsel %vm532, %v528, %v531
        %s537 = scalar_lea.vmem %s5, 3
        %v538 = vld [vmem:[%s537] ss:$8 sm:$0x3]
        %v540 = vlaneseq
        %v541 = vshrl.u32 %v540, 7
        %v542 = vsub.s32 0, %v541
        %v543 = vrot.slane %v538, %v542
        %v544 = vlaneseq
        %v545 = vshrl.u32 %v544, 7
        %v546 = vsub.s32 1, %v545
        %v547 = vrot.slane %v538, %v546
        %v550 = vmul.f32 %v536, %v543
        %v551 = vmul.f32 %v533, %v547
        %s552 = scalar_lea.vmem %s1, 12
        %v553 = vld [vmem:[%s552] sm:$0xf]
        %555 = vset.pattern.permute.xlu0 0
        %556 = vperm.xlu0 %555, %v553
        %v557 = vpop.permute.xlu0 %556
        %v559 = vlaneseq
        %v560 = vshrl.u32 %v559, 7
        %v561 = vsub.s32 0, %v560
        %v562 = vrot.slane %v550, %v561
        %v563 = vlaneseq
        %v564 = vshrl.u32 %v563, 7
        %v565 = vsub.s32 0, %v564
        %v566 = vrot.slane %v551, %v565
        %v567 = vmul.f32 %v557, %v562
        %v568 = vmul.f32 %v557, %v566
        %v569 = vadd.f32 %v525, %v567
        %v570 = vadd.f32 %v526, %v568
        %571 = vset.pattern.permute.xlu0 1
        %572 = vperm.xlu0 %571, %v553
        %v573 = vpop.permute.xlu0 %572
        %v575 = vlaneseq
        %v576 = vshrl.u32 %v575, 7
        %v577 = vsub.s32 1, %v576
        %v578 = vrot.slane %v550, %v577
        %v579 = vlaneseq
        %v580 = vshrl.u32 %v579, 7
        %v581 = vsub.s32 1, %v580
        %v582 = vrot.slane %v551, %v581
        %v583 = vmul.f32 %v573, %v578
        %v584 = vmul.f32 %v573, %v582
        %v585 = vadd.f32 %v569, %v583
        %v586 = vadd.f32 %v570, %v584
        %587 = vset.pattern.permute.xlu0 2
        %588 = vperm.xlu0 %587, %v553
        %v589 = vpop.permute.xlu0 %588
        %v591 = vlaneseq
        %v592 = vshrl.u32 %v591, 7
        %v593 = vsub.s32 2, %v592
        %v594 = vrot.slane %v550, %v593
        %v595 = vlaneseq
        %v596 = vshrl.u32 %v595, 7
        %v597 = vsub.s32 2, %v596
        %v598 = vrot.slane %v551, %v597
        %v599 = vmul.f32 %v589, %v594
        %v600 = vmul.f32 %v589, %v598
        %v601 = vadd.f32 %v585, %v599
        %v602 = vadd.f32 %v586, %v600
        %603 = vset.pattern.permute.xlu0 3
        %604 = vperm.xlu0 %603, %v553
        %v605 = vpop.permute.xlu0 %604
        %v607 = vlaneseq
        %v608 = vshrl.u32 %v607, 7
        %v609 = vsub.s32 3, %v608
        %v610 = vrot.slane %v550, %v609
        %v611 = vlaneseq
        %v612 = vshrl.u32 %v611, 7
        %v613 = vsub.s32 3, %v612
        %v614 = vrot.slane %v551, %v613
        %v615 = vmul.f32 %v605, %v610
        %v616 = vmul.f32 %v605, %v614
        %v617 = vadd.f32 %v601, %v615
        %v618 = vadd.f32 %v602, %v616
        %s619 = scalar_lea.vmem %s5, 4
        %v620 = vld [vmem:[%s619] ss:$8 sm:$0x3]
        %v622 = vlaneseq
        %v623 = vshrl.u32 %v622, 7
        %v624 = vsub.s32 0, %v623
        %v625 = vrot.slane %v620, %v624
        %v626 = vlaneseq
        %v627 = vshrl.u32 %v626, 7
        %v628 = vsub.s32 1, %v627
        %v629 = vrot.slane %v620, %v628
        %v632 = vcombine.low %v625, %v629
        %v634 = vmul.f32 %v250, %v632
        %s635 = scalar_lea.vmem %s1, 16
        %v636 = vld [vmem:[%s635] sm:$0xf]
        %638 = vset.pattern.permute.xlu0 0
        %639 = vperm.xlu0 %638, %v636
        %v640 = vpop.permute.xlu0 %639
        %v643 = vlaneseq
        %v644 = vshrl.u32 %v643, 7
        %v645 = vsub.s32 0, %v644
        %v646 = vrot.slane %v634, %v645
        %v647 = vlaneseq
        %v648 = vshrl.u32 %v647, 7
        %v649 = vsub.s32 4, %v648
        %v650 = vrot.slane %v634, %v649
        %v653 = vlaneseq
        %v654 = vshrl.u32 %v653, 7
        %v655 = vsub.s32 0, %v654
        %v656 = vrot.slane %v646, %v655
        %v657 = vlaneseq
        %v658 = vshrl.u32 %v657, 7
        %v659 = vsub.s32 0, %v658
        %v660 = vrot.slane %v650, %v659
        %v661 = vmul.f32 %v640, %v656
        %v662 = vmul.f32 %v640, %v660
        %v663 = vadd.f32 %v617, %v661
        %v664 = vadd.f32 %v618, %v662
        %665 = vset.pattern.permute.xlu0 1
        %666 = vperm.xlu0 %665, %v636
        %v667 = vpop.permute.xlu0 %666
        %v669 = vlaneseq
        %v670 = vshrl.u32 %v669, 7
        %v671 = vsub.s32 1, %v670
        %v672 = vrot.slane %v634, %v671
        %v673 = vlaneseq
        %v674 = vshrl.u32 %v673, 7
        %v675 = vsub.s32 5, %v674
        %v676 = vrot.slane %v634, %v675
        %v679 = vlaneseq
        %v680 = vshrl.u32 %v679, 7
        %v681 = vsub.s32 1, %v680
        %v682 = vrot.slane %v672, %v681
        %v683 = vlaneseq
        %v684 = vshrl.u32 %v683, 7
        %v685 = vsub.s32 1, %v684
        %v686 = vrot.slane %v676, %v685
        %v687 = vmul.f32 %v667, %v682
        %v688 = vmul.f32 %v667, %v686
        %v689 = vadd.f32 %v663, %v687
        %v690 = vadd.f32 %v664, %v688
        %691 = vset.pattern.permute.xlu0 2
        %692 = vperm.xlu0 %691, %v636
        %v693 = vpop.permute.xlu0 %692
        %v695 = vlaneseq
        %v696 = vshrl.u32 %v695, 7
        %v697 = vsub.s32 2, %v696
        %v698 = vrot.slane %v634, %v697
        %v699 = vlaneseq
        %v700 = vshrl.u32 %v699, 7
        %v701 = vsub.s32 6, %v700
        %v702 = vrot.slane %v634, %v701
        %v705 = vlaneseq
        %v706 = vshrl.u32 %v705, 7
        %v707 = vsub.s32 2, %v706
        %v708 = vrot.slane %v698, %v707
        %v709 = vlaneseq
        %v710 = vshrl.u32 %v709, 7
        %v711 = vsub.s32 2, %v710
        %v712 = vrot.slane %v702, %v711
        %v713 = vmul.f32 %v693, %v708
        %v714 = vmul.f32 %v693, %v712
        %v715 = vadd.f32 %v689, %v713
        %v716 = vadd.f32 %v690, %v714
        %717 = vset.pattern.permute.xlu0 3
        %718 = vperm.xlu0 %717, %v636
        %v719 = vpop.permute.xlu0 %718
        %v721 = vlaneseq
        %v722 = vshrl.u32 %v721, 7
        %v723 = vsub.s32 3, %v722
        %v724 = vrot.slane %v634, %v723
        %v725 = vlaneseq
        %v726 = vshrl.u32 %v725, 7
        %v727 = vsub.s32 7, %v726
        %v728 = vrot.slane %v634, %v727
        %v731 = vlaneseq
        %v732 = vshrl.u32 %v731, 7
        %v733 = vsub.s32 3, %v732
        %v734 = vrot.slane %v724, %v733
        %v735 = vlaneseq
        %v736 = vshrl.u32 %v735, 7
        %v737 = vsub.s32 3, %v736
        %v738 = vrot.slane %v728, %v737
        %v739 = vmul.f32 %v719, %v734
        %v740 = vmul.f32 %v719, %v738
        %v741 = vadd.f32 %v715, %v739
        %v742 = vadd.f32 %v716, %v740
        %743 = vrot.lane.b32.xlu0 %v250, 127
        %v744 = vpop.permute.xlu0 %743
        %745 = vrot.lane.b32.xlu0 %v252, 127
        %v746 = vpop.permute.xlu0 %745
        %vm747 = vcmask 1039360
        %v748 = vsel %vm747, %v744, %v746
        %v752 = vsel %vm747, %v746, %v744
        %s753 = scalar_lea.vmem %s5, 5
        %v754 = vld [vmem:[%s753] ss:$8 sm:$0x3]
        %v756 = vlaneseq
        %v757 = vshrl.u32 %v756, 7
        %v758 = vsub.s32 0, %v757
        %v759 = vrot.slane %v754, %v758
        %v760 = vlaneseq
        %v761 = vshrl.u32 %v760, 7
        %v762 = vsub.s32 1, %v761
        %v763 = vrot.slane %v754, %v762
        %v766 = vmul.f32 %v748, %v759
        %v767 = vmul.f32 %v752, %v763
        %s768 = scalar_lea.vmem %s1, 20
        %v769 = vld [vmem:[%s768] sm:$0xf]
        %771 = vset.pattern.permute.xlu0 0
        %772 = vperm.xlu0 %771, %v769
        %v773 = vpop.permute.xlu0 %772
        %v775 = vlaneseq
        %v776 = vshrl.u32 %v775, 7
        %v777 = vsub.s32 0, %v776
        %v778 = vrot.slane %v766, %v777
        %v779 = vlaneseq
        %v780 = vshrl.u32 %v779, 7
        %v781 = vsub.s32 0, %v780
        %v782 = vrot.slane %v767, %v781
        %v783 = vmul.f32 %v773, %v778
        %v784 = vmul.f32 %v773, %v782
        %v785 = vadd.f32 %v741, %v783
        %v786 = vadd.f32 %v742, %v784
        %787 = vset.pattern.permute.xlu0 1
        %788 = vperm.xlu0 %787, %v769
        %v789 = vpop.permute.xlu0 %788
        %v791 = vlaneseq
        %v792 = vshrl.u32 %v791, 7
        %v793 = vsub.s32 1, %v792
        %v794 = vrot.slane %v766, %v793
        %v795 = vlaneseq
        %v796 = vshrl.u32 %v795, 7
        %v797 = vsub.s32 1, %v796
        %v798 = vrot.slane %v767, %v797
        %v799 = vmul.f32 %v789, %v794
        %v800 = vmul.f32 %v789, %v798
        %v801 = vadd.f32 %v785, %v799
        %v802 = vadd.f32 %v786, %v800
        %803 = vset.pattern.permute.xlu0 2
        %804 = vperm.xlu0 %803, %v769
        %v805 = vpop.permute.xlu0 %804
        %v807 = vlaneseq
        %v808 = vshrl.u32 %v807, 7
        %v809 = vsub.s32 2, %v808
        %v810 = vrot.slane %v766, %v809
        %v811 = vlaneseq
        %v812 = vshrl.u32 %v811, 7
        %v813 = vsub.s32 2, %v812
        %v814 = vrot.slane %v767, %v813
        %v815 = vmul.f32 %v805, %v810
        %v816 = vmul.f32 %v805, %v814
        %v817 = vadd.f32 %v801, %v815
        %v818 = vadd.f32 %v802, %v816
        %819 = vset.pattern.permute.xlu0 3
        %820 = vperm.xlu0 %819, %v769
        %v821 = vpop.permute.xlu0 %820
        %v823 = vlaneseq
        %v824 = vshrl.u32 %v823, 7
        %v825 = vsub.s32 3, %v824
        %v826 = vrot.slane %v766, %v825
        %v827 = vlaneseq
        %v828 = vshrl.u32 %v827, 7
        %v829 = vsub.s32 3, %v828
        %v830 = vrot.slane %v767, %v829
        %v831 = vmul.f32 %v821, %v826
        %v832 = vmul.f32 %v821, %v830
        %v833 = vadd.f32 %v817, %v831
        %v834 = vadd.f32 %v818, %v832
        %835 = vrot.lane.b32.xlu0 %v250, 113
        %v836 = vpop.permute.xlu0 %835
        %837 = vrot.lane.b32.xlu0 %v252, 113
        %v838 = vpop.permute.xlu0 %837
        %vm839 = vcmask 924672
        %v840 = vsel %vm839, %v836, %v838
        %v844 = vsel %vm839, %v838, %v836
        %s845 = scalar_lea.vmem %s5, 6
        %v846 = vld [vmem:[%s845] ss:$8 sm:$0x3]
        %v848 = vlaneseq
        %v849 = vshrl.u32 %v848, 7
        %v850 = vsub.s32 0, %v849
        %v851 = vrot.slane %v846, %v850
        %v852 = vlaneseq
        %v853 = vshrl.u32 %v852, 7
        %v854 = vsub.s32 1, %v853
        %v855 = vrot.slane %v846, %v854
        %v858 = vmul.f32 %v840, %v851
        %v859 = vmul.f32 %v844, %v855
        %s860 = scalar_lea.vmem %s1, 24
        %v861 = vld [vmem:[%s860] sm:$0xf]
        %863 = vset.pattern.permute.xlu0 0
        %864 = vperm.xlu0 %863, %v861
        %v865 = vpop.permute.xlu0 %864
        %v867 = vlaneseq
        %v868 = vshrl.u32 %v867, 7
        %v869 = vsub.s32 0, %v868
        %v870 = vrot.slane %v858, %v869
        %v871 = vlaneseq
        %v872 = vshrl.u32 %v871, 7
        %v873 = vsub.s32 0, %v872
        %v874 = vrot.slane %v859, %v873
        %v875 = vmul.f32 %v865, %v870
        %v876 = vmul.f32 %v865, %v874
        %v877 = vadd.f32 %v833, %v875
        %v878 = vadd.f32 %v834, %v876
        %879 = vset.pattern.permute.xlu0 1
        %880 = vperm.xlu0 %879, %v861
        %v881 = vpop.permute.xlu0 %880
        %v883 = vlaneseq
        %v884 = vshrl.u32 %v883, 7
        %v885 = vsub.s32 1, %v884
        %v886 = vrot.slane %v858, %v885
        %v887 = vlaneseq
        %v888 = vshrl.u32 %v887, 7
        %v889 = vsub.s32 1, %v888
        %v890 = vrot.slane %v859, %v889
        %v891 = vmul.f32 %v881, %v886
        %v892 = vmul.f32 %v881, %v890
        %v893 = vadd.f32 %v877, %v891
        %v894 = vadd.f32 %v878, %v892
        %895 = vset.pattern.permute.xlu0 2
        %896 = vperm.xlu0 %895, %v861
        %v897 = vpop.permute.xlu0 %896
        %v899 = vlaneseq
        %v900 = vshrl.u32 %v899, 7
        %v901 = vsub.s32 2, %v900
        %v902 = vrot.slane %v858, %v901
        %v903 = vlaneseq
        %v904 = vshrl.u32 %v903, 7
        %v905 = vsub.s32 2, %v904
        %v906 = vrot.slane %v859, %v905
        %v907 = vmul.f32 %v897, %v902
        %v908 = vmul.f32 %v897, %v906
        %v909 = vadd.f32 %v893, %v907
        %v910 = vadd.f32 %v894, %v908
        %911 = vset.pattern.permute.xlu0 3
        %912 = vperm.xlu0 %911, %v861
        %v913 = vpop.permute.xlu0 %912
        %v915 = vlaneseq
        %v916 = vshrl.u32 %v915, 7
        %v917 = vsub.s32 3, %v916
        %v918 = vrot.slane %v858, %v917
        %v919 = vlaneseq
        %v920 = vshrl.u32 %v919, 7
        %v921 = vsub.s32 3, %v920
        %v922 = vrot.slane %v859, %v921
        %v923 = vmul.f32 %v913, %v918
        %v924 = vmul.f32 %v913, %v922
        %v925 = vadd.f32 %v909, %v923
        %v926 = vadd.f32 %v910, %v924
        %927 = vrot.lane.b32.xlu0 %v250, 112
        %v928 = vpop.permute.xlu0 %927
        %929 = vrot.lane.b32.xlu0 %v252, 112
        %v930 = vpop.permute.xlu0 %929
        %vm931 = vcmask 916480
        %v932 = vsel %vm931, %v928, %v930
        %v936 = vsel %vm931, %v930, %v928
        %s937 = scalar_lea.vmem %s5, 7
        %v938 = vld [vmem:[%s937] ss:$8 sm:$0x3]
        %v940 = vlaneseq
        %v941 = vshrl.u32 %v940, 7
        %v942 = vsub.s32 0, %v941
        %v943 = vrot.slane %v938, %v942
        %v944 = vlaneseq
        %v945 = vshrl.u32 %v944, 7
        %v946 = vsub.s32 1, %v945
        %v947 = vrot.slane %v938, %v946
        %v950 = vmul.f32 %v932, %v943
        %v951 = vmul.f32 %v936, %v947
        %s952 = scalar_lea.vmem %s1, 28
        %v953 = vld [vmem:[%s952] sm:$0xf]
        %955 = vset.pattern.permute.xlu0 0
        %956 = vperm.xlu0 %955, %v953
        %v957 = vpop.permute.xlu0 %956
        %v959 = vlaneseq
        %v960 = vshrl.u32 %v959, 7
        %v961 = vsub.s32 0, %v960
        %v962 = vrot.slane %v950, %v961
        %v963 = vlaneseq
        %v964 = vshrl.u32 %v963, 7
        %v965 = vsub.s32 0, %v964
        %v966 = vrot.slane %v951, %v965
        %v967 = vmul.f32 %v957, %v962
        %v968 = vmul.f32 %v957, %v966
        %v969 = vadd.f32 %v925, %v967
        %v970 = vadd.f32 %v926, %v968
        %971 = vset.pattern.permute.xlu0 1
        %972 = vperm.xlu0 %971, %v953
        %v973 = vpop.permute.xlu0 %972
        %v975 = vlaneseq
        %v976 = vshrl.u32 %v975, 7
        %v977 = vsub.s32 1, %v976
        %v978 = vrot.slane %v950, %v977
        %v979 = vlaneseq
        %v980 = vshrl.u32 %v979, 7
        %v981 = vsub.s32 1, %v980
        %v982 = vrot.slane %v951, %v981
        %v983 = vmul.f32 %v973, %v978
        %v984 = vmul.f32 %v973, %v982
        %v985 = vadd.f32 %v969, %v983
        %v986 = vadd.f32 %v970, %v984
        %987 = vset.pattern.permute.xlu0 2
        %988 = vperm.xlu0 %987, %v953
        %v989 = vpop.permute.xlu0 %988
        %v991 = vlaneseq
        %v992 = vshrl.u32 %v991, 7
        %v993 = vsub.s32 2, %v992
        %v994 = vrot.slane %v950, %v993
        %v995 = vlaneseq
        %v996 = vshrl.u32 %v995, 7
        %v997 = vsub.s32 2, %v996
        %v998 = vrot.slane %v951, %v997
        %v999 = vmul.f32 %v989, %v994
        %v1000 = vmul.f32 %v989, %v998
        %v1001 = vadd.f32 %v985, %v999
        %v1002 = vadd.f32 %v986, %v1000
        %1003 = vset.pattern.permute.xlu0 3
        %1004 = vperm.xlu0 %1003, %v953
        %v1005 = vpop.permute.xlu0 %1004
        %v1007 = vlaneseq
        %v1008 = vshrl.u32 %v1007, 7
        %v1009 = vsub.s32 3, %v1008
        %v1010 = vrot.slane %v950, %v1009
        %v1011 = vlaneseq
        %v1012 = vshrl.u32 %v1011, 7
        %v1013 = vsub.s32 3, %v1012
        %v1014 = vrot.slane %v951, %v1013
        %v1015 = vmul.f32 %v1005, %v1010
        %v1016 = vmul.f32 %v1005, %v1014
        %v1017 = vadd.f32 %v1001, %v1015
        %v1018 = vadd.f32 %v1002, %v1016
        %1019 = vrot.lane.b32.xlu0 %v250, 111
        %v1020 = vpop.permute.xlu0 %1019
        %1021 = vrot.lane.b32.xlu0 %v252, 111
        %v1022 = vpop.permute.xlu0 %1021
        %vm1023 = vcmask 908288
        %v1024 = vsel %vm1023, %v1020, %v1022
        %v1028 = vsel %vm1023, %v1022, %v1020
        %s1029 = scalar_lea.vmem %s5, 16
        %v1030 = vld [vmem:[%s1029] ss:$8 sm:$0x3]
        %v1032 = vlaneseq
        %v1033 = vshrl.u32 %v1032, 7
        %v1034 = vsub.s32 0, %v1033
        %v1035 = vrot.slane %v1030, %v1034
        %v1036 = vlaneseq
        %v1037 = vshrl.u32 %v1036, 7
        %v1038 = vsub.s32 1, %v1037
        %v1039 = vrot.slane %v1030, %v1038
        %v1042 = vmul.f32 %v1024, %v1035
        %v1043 = vmul.f32 %v1028, %v1039
        %s1044 = scalar_lea.vmem %s1, 32
        %v1045 = vld [vmem:[%s1044] sm:$0xf]
        %1047 = vset.pattern.permute.xlu0 0
        %1048 = vperm.xlu0 %1047, %v1045
        %v1049 = vpop.permute.xlu0 %1048
        %v1051 = vlaneseq
        %v1052 = vshrl.u32 %v1051, 7
        %v1053 = vsub.s32 0, %v1052
        %v1054 = vrot.slane %v1042, %v1053
        %v1055 = vlaneseq
        %v1056 = vshrl.u32 %v1055, 7
        %v1057 = vsub.s32 0, %v1056
        %v1058 = vrot.slane %v1043, %v1057
        %v1059 = vmul.f32 %v1049, %v1054
        %v1060 = vmul.f32 %v1049, %v1058
        %v1061 = vadd.f32 %v1017, %v1059
        %v1062 = vadd.f32 %v1018, %v1060
        %1063 = vset.pattern.permute.xlu0 1
        %1064 = vperm.xlu0 %1063, %v1045
        %v1065 = vpop.permute.xlu0 %1064
        %v1067 = vlaneseq
        %v1068 = vshrl.u32 %v1067, 7
        %v1069 = vsub.s32 1, %v1068
        %v1070 = vrot.slane %v1042, %v1069
        %v1071 = vlaneseq
        %v1072 = vshrl.u32 %v1071, 7
        %v1073 = vsub.s32 1, %v1072
        %v1074 = vrot.slane %v1043, %v1073
        %v1075 = vmul.f32 %v1065, %v1070
        %v1076 = vmul.f32 %v1065, %v1074
        %v1077 = vadd.f32 %v1061, %v1075
        %v1078 = vadd.f32 %v1062, %v1076
        %1079 = vset.pattern.permute.xlu0 2
        %1080 = vperm.xlu0 %1079, %v1045
        %v1081 = vpop.permute.xlu0 %1080
        %v1083 = vlaneseq
        %v1084 = vshrl.u32 %v1083, 7
        %v1085 = vsub.s32 2, %v1084
        %v1086 = vrot.slane %v1042, %v1085
        %v1087 = vlaneseq
        %v1088 = vshrl.u32 %v1087, 7
        %v1089 = vsub.s32 2, %v1088
        %v1090 = vrot.slane %v1043, %v1089
        %v1091 = vmul.f32 %v1081, %v1086
        %v1092 = vmul.f32 %v1081, %v1090
        %v1093 = vadd.f32 %v1077, %v1091
        %v1094 = vadd.f32 %v1078, %v1092
        %1095 = vset.pattern.permute.xlu0 3
        %1096 = vperm.xlu0 %1095, %v1045
        %v1097 = vpop.permute.xlu0 %1096
        %v1099 = vlaneseq
        %v1100 = vshrl.u32 %v1099, 7
        %v1101 = vsub.s32 3, %v1100
        %v1102 = vrot.slane %v1042, %v1101
        %v1103 = vlaneseq
        %v1104 = vshrl.u32 %v1103, 7
        %v1105 = vsub.s32 3, %v1104
        %v1106 = vrot.slane %v1043, %v1105
        %v1107 = vmul.f32 %v1097, %v1102
        %v1108 = vmul.f32 %v1097, %v1106
        %v1109 = vadd.f32 %v1093, %v1107
        %v1110 = vadd.f32 %v1094, %v1108
        %v1111 = vld [vmem:[%s3] sm:$0xf]
        %1113 = vset.pattern.permute.xlu0 0
        %1114 = vperm.xlu0 %1113, %v1111
        %v1115 = vpop.permute.xlu0 %1114
        %v1117 = vadd.f32 %v1109, %v1115
        %v1118 = vadd.f32 %v1110, %v1115
        %vm1119 = vcmp.ge.f32.partialorder %v1117, 0.0
        %vm1120 = vcmp.ge.f32.partialorder %v1118, 0.0
        %v1121 = vmul.f32 %v1117, 0.2
        %v1122 = vmul.f32 %v1118, 0.2
        %v1123 = vsel %vm1119, %v1117, %v1121
        %v1124 = vsel %vm1120, %v1118, %v1122
        %1126 = vrot.lane.b32.xlu0 %v1124, 17
        %v1127 = vpop.permute.xlu0 %1126
        %1130 = vrot.lane.b32.xlu0 %v1123, 17
        %v1131 = vpop.permute.xlu0 %1130
        %v1132 = vsel %vm258, %v1131, %v1127
        %v1135 = vsel %vm258, %v1127, %v1131
        %v1136 = vmul.f32 %v1135, %v268
        %v1137 = vmul.f32 %v1132, %v272
        %v1138 = vld [vmem:[%s2] sm:$0xf]
        %1140 = vset.pattern.permute.xlu0 0
        %1141 = vperm.xlu0 %1140, %v1138
        %v1142 = vpop.permute.xlu0 %1141
        %v1144 = vlaneseq
        %v1145 = vshrl.u32 %v1144, 7
        %v1146 = vsub.s32 0, %v1145
        %v1147 = vrot.slane %v1136, %v1146
        %v1148 = vlaneseq
        %v1149 = vshrl.u32 %v1148, 7
        %v1150 = vsub.s32 0, %v1149
        %v1151 = vrot.slane %v1137, %v1150
        %v1152 = vmul.f32 %v1142, %v1147
        %v1153 = vmul.f32 %v1142, %v1151
        %v1154 = vadd.f32 %v1152, 0.0
        %v1155 = vadd.f32 %v1153, 0.0
        %1156 = vset.pattern.permute.xlu0 1
        %1157 = vperm.xlu0 %1156, %v1138
        %v1158 = vpop.permute.xlu0 %1157
        %v1160 = vlaneseq
        %v1161 = vshrl.u32 %v1160, 7
        %v1162 = vsub.s32 1, %v1161
        %v1163 = vrot.slane %v1136, %v1162
        %v1164 = vlaneseq
        %v1165 = vshrl.u32 %v1164, 7
        %v1166 = vsub.s32 1, %v1165
        %v1167 = vrot.slane %v1137, %v1166
        %v1168 = vmul.f32 %v1158, %v1163
        %v1169 = vmul.f32 %v1158, %v1167
        %v1170 = vadd.f32 %v1154, %v1168
        %v1171 = vadd.f32 %v1155, %v1169
        %1172 = vset.pattern.permute.xlu0 2
        %1173 = vperm.xlu0 %1172, %v1138
        %v1174 = vpop.permute.xlu0 %1173
        %v1176 = vlaneseq
        %v1177 = vshrl.u32 %v1176, 7
        %v1178 = vsub.s32 2, %v1177
        %v1179 = vrot.slane %v1136, %v1178
        %v1180 = vlaneseq
        %v1181 = vshrl.u32 %v1180, 7
        %v1182 = vsub.s32 2, %v1181
        %v1183 = vrot.slane %v1137, %v1182
        %v1184 = vmul.f32 %v1174, %v1179
        %v1185 = vmul.f32 %v1174, %v1183
        %v1186 = vadd.f32 %v1170, %v1184
        %v1187 = vadd.f32 %v1171, %v1185
        %1188 = vset.pattern.permute.xlu0 3
        %1189 = vperm.xlu0 %1188, %v1138
        %v1190 = vpop.permute.xlu0 %1189
        %v1192 = vlaneseq
        %v1193 = vshrl.u32 %v1192, 7
        %v1194 = vsub.s32 3, %v1193
        %v1195 = vrot.slane %v1136, %v1194
        %v1196 = vlaneseq
        %v1197 = vshrl.u32 %v1196, 7
        %v1198 = vsub.s32 3, %v1197
        %v1199 = vrot.slane %v1137, %v1198
        %v1200 = vmul.f32 %v1190, %v1195
        %v1201 = vmul.f32 %v1190, %v1199
        %v1202 = vadd.f32 %v1186, %v1200
        %v1203 = vadd.f32 %v1187, %v1201
        %1204 = vrot.lane.b32.xlu0 %v1124, 16
        %v1205 = vpop.permute.xlu0 %1204
        %1207 = vrot.lane.b32.xlu0 %v1123, 16
        %v1208 = vpop.permute.xlu0 %1207
        %v1209 = vsel %vm348, %v1208, %v1205
        %v1212 = vsel %vm348, %v1205, %v1208
        %v1213 = vmul.f32 %v1212, %v359
        %v1214 = vmul.f32 %v1209, %v363
        %s1215 = scalar_lea.vmem %s2, 4
        %v1216 = vld [vmem:[%s1215] sm:$0xf]
        %1218 = vset.pattern.permute.xlu0 0
        %1219 = vperm.xlu0 %1218, %v1216
        %v1220 = vpop.permute.xlu0 %1219
        %v1222 = vlaneseq
        %v1223 = vshrl.u32 %v1222, 7
        %v1224 = vsub.s32 0, %v1223
        %v1225 = vrot.slane %v1213, %v1224
        %v1226 = vlaneseq
        %v1227 = vshrl.u32 %v1226, 7
        %v1228 = vsub.s32 0, %v1227
        %v1229 = vrot.slane %v1214, %v1228
        %v1230 = vmul.f32 %v1220, %v1225
        %v1231 = vmul.f32 %v1220, %v1229
        %v1232 = vadd.f32 %v1202, %v1230
        %v1233 = vadd.f32 %v1203, %v1231
        %1234 = vset.pattern.permute.xlu0 1
        %1235 = vperm.xlu0 %1234, %v1216
        %v1236 = vpop.permute.xlu0 %1235
        %v1238 = vlaneseq
        %v1239 = vshrl.u32 %v1238, 7
        %v1240 = vsub.s32 1, %v1239
        %v1241 = vrot.slane %v1213, %v1240
        %v1242 = vlaneseq
        %v1243 = vshrl.u32 %v1242, 7
        %v1244 = vsub.s32 1, %v1243
        %v1245 = vrot.slane %v1214, %v1244
        %v1246 = vmul.f32 %v1236, %v1241
        %v1247 = vmul.f32 %v1236, %v1245
        %v1248 = vadd.f32 %v1232, %v1246
        %v1249 = vadd.f32 %v1233, %v1247
        %1250 = vset.pattern.permute.xlu0 2
        %1251 = vperm.xlu0 %1250, %v1216
        %v1252 = vpop.permute.xlu0 %1251
        %v1254 = vlaneseq
        %v1255 = vshrl.u32 %v1254, 7
        %v1256 = vsub.s32 2, %v1255
        %v1257 = vrot.slane %v1213, %v1256
        %v1258 = vlaneseq
        %v1259 = vshrl.u32 %v1258, 7
        %v1260 = vsub.s32 2, %v1259
        %v1261 = vrot.slane %v1214, %v1260
        %v1262 = vmul.f32 %v1252, %v1257
        %v1263 = vmul.f32 %v1252, %v1261
        %v1264 = vadd.f32 %v1248, %v1262
        %v1265 = vadd.f32 %v1249, %v1263
        %1266 = vset.pattern.permute.xlu0 3
        %1267 = vperm.xlu0 %1266, %v1216
        %v1268 = vpop.permute.xlu0 %1267
        %v1270 = vlaneseq
        %v1271 = vshrl.u32 %v1270, 7
        %v1272 = vsub.s32 3, %v1271
        %v1273 = vrot.slane %v1213, %v1272
        %v1274 = vlaneseq
        %v1275 = vshrl.u32 %v1274, 7
        %v1276 = vsub.s32 3, %v1275
        %v1277 = vrot.slane %v1214, %v1276
        %v1278 = vmul.f32 %v1268, %v1273
        %v1279 = vmul.f32 %v1268, %v1277
        %v1280 = vadd.f32 %v1264, %v1278
        %v1281 = vadd.f32 %v1265, %v1279
        %1282 = vrot.lane.b32.xlu0 %v1124, 15
        %v1283 = vpop.permute.xlu0 %1282
        %1285 = vrot.lane.b32.xlu0 %v1123, 15
        %v1286 = vpop.permute.xlu0 %1285
        %v1287 = vsel %vm440, %v1286, %v1283
        %v1290 = vsel %vm440, %v1283, %v1286
        %v1291 = vmul.f32 %v1290, %v451
        %v1292 = vmul.f32 %v1287, %v455
        %s1293 = scalar_lea.vmem %s2, 8
        %v1294 = vld [vmem:[%s1293] sm:$0xf]
        %1296 = vset.pattern.permute.xlu0 0
        %1297 = vperm.xlu0 %1296, %v1294
        %v1298 = vpop.permute.xlu0 %1297
        %v1300 = vlaneseq
        %v1301 = vshrl.u32 %v1300, 7
        %v1302 = vsub.s32 0, %v1301
        %v1303 = vrot.slane %v1291, %v1302
        %v1304 = vlaneseq
        %v1305 = vshrl.u32 %v1304, 7
        %v1306 = vsub.s32 0, %v1305
        %v1307 = vrot.slane %v1292, %v1306
        %v1308 = vmul.f32 %v1298, %v1303
        %v1309 = vmul.f32 %v1298, %v1307
        %v1310 = vadd.f32 %v1280, %v1308
        %v1311 = vadd.f32 %v1281, %v1309
        %1312 = vset.pattern.permute.xlu0 1
        %1313 = vperm.xlu0 %1312, %v1294
        %v1314 = vpop.permute.xlu0 %1313
        %v1316 = vlaneseq
        %v1317 = vshrl.u32 %v1316, 7
        %v1318 = vsub.s32 1, %v1317
        %v1319 = vrot.slane %v1291, %v1318
        %v1320 = vlaneseq
        %v1321 = vshrl.u32 %v1320, 7
        %v1322 = vsub.s32 1, %v1321
        %v1323 = vrot.slane %v1292, %v1322
        %v1324 = vmul.f32 %v1314, %v1319
        %v1325 = vmul.f32 %v1314, %v1323
        %v1326 = vadd.f32 %v1310, %v1324
        %v1327 = vadd.f32 %v1311, %v1325
        %1328 = vset.pattern.permute.xlu0 2
        %1329 = vperm.xlu0 %1328, %v1294
        %v1330 = vpop.permute.xlu0 %1329
        %v1332 = vlaneseq
        %v1333 = vshrl.u32 %v1332, 7
        %v1334 = vsub.s32 2, %v1333
        %v1335 = vrot.slane %v1291, %v1334
        %v1336 = vlaneseq
        %v1337 = vshrl.u32 %v1336, 7
        %v1338 = vsub.s32 2, %v1337
        %v1339 = vrot.slane %v1292, %v1338
        %v1340 = vmul.f32 %v1330, %v1335
        %v1341 = vmul.f32 %v1330, %v1339
        %v1342 = vadd.f32 %v1326, %v1340
        %v1343 = vadd.f32 %v1327, %v1341
        %1344 = vset.pattern.permute.xlu0 3
        %1345 = vperm.xlu0 %1344, %v1294
        %v1346 = vpop.permute.xlu0 %1345
        %v1348 = vlaneseq
        %v1349 = vshrl.u32 %v1348, 7
        %v1350 = vsub.s32 3, %v1349
        %v1351 = vrot.slane %v1291, %v1350
        %v1352 = vlaneseq
        %v1353 = vshrl.u32 %v1352, 7
        %v1354 = vsub.s32 3, %v1353
        %v1355 = vrot.slane %v1292, %v1354
        %v1356 = vmul.f32 %v1346, %v1351
        %v1357 = vmul.f32 %v1346, %v1355
        %v1358 = vadd.f32 %v1342, %v1356
        %v1359 = vadd.f32 %v1343, %v1357
        %1360 = vrot.lane.b32.xlu0 %v1124, 1
        %v1361 = vpop.permute.xlu0 %1360
        %1363 = vrot.lane.b32.xlu0 %v1123, 1
        %v1364 = vpop.permute.xlu0 %1363
        %v1365 = vsel %vm532, %v1364, %v1361
        %v1368 = vsel %vm532, %v1361, %v1364
        %v1369 = vmul.f32 %v1368, %v543
        %v1370 = vmul.f32 %v1365, %v547
        %s1371 = scalar_lea.vmem %s2, 12
        %v1372 = vld [vmem:[%s1371] sm:$0xf]
        %1374 = vset.pattern.permute.xlu0 0
        %1375 = vperm.xlu0 %1374, %v1372
        %v1376 = vpop.permute.xlu0 %1375
        %v1378 = vlaneseq
        %v1379 = vshrl.u32 %v1378, 7
        %v1380 = vsub.s32 0, %v1379
        %v1381 = vrot.slane %v1369, %v1380
        %v1382 = vlaneseq
        %v1383 = vshrl.u32 %v1382, 7
        %v1384 = vsub.s32 0, %v1383
        %v1385 = vrot.slane %v1370, %v1384
        %v1386 = vmul.f32 %v1376, %v1381
        %v1387 = vmul.f32 %v1376, %v1385
        %v1388 = vadd.f32 %v1358, %v1386
        %v1389 = vadd.f32 %v1359, %v1387
        %1390 = vset.pattern.permute.xlu0 1
        %1391 = vperm.xlu0 %1390, %v1372
        %v1392 = vpop.permute.xlu0 %1391
        %v1394 = vlaneseq
        %v1395 = vshrl.u32 %v1394, 7
        %v1396 = vsub.s32 1, %v1395
        %v1397 = vrot.slane %v1369, %v1396
        %v1398 = vlaneseq
        %v1399 = vshrl.u32 %v1398, 7
        %v1400 = vsub.s32 1, %v1399
        %v1401 = vrot.slane %v1370, %v1400
        %v1402 = vmul.f32 %v1392, %v1397
        %v1403 = vmul.f32 %v1392, %v1401
        %v1404 = vadd.f32 %v1388, %v1402
        %v1405 = vadd.f32 %v1389, %v1403
        %1406 = vset.pattern.permute.xlu0 2
        %1407 = vperm.xlu0 %1406, %v1372
        %v1408 = vpop.permute.xlu0 %1407
        %v1410 = vlaneseq
        %v1411 = vshrl.u32 %v1410, 7
        %v1412 = vsub.s32 2, %v1411
        %v1413 = vrot.slane %v1369, %v1412
        %v1414 = vlaneseq
        %v1415 = vshrl.u32 %v1414, 7
        %v1416 = vsub.s32 2, %v1415
        %v1417 = vrot.slane %v1370, %v1416
        %v1418 = vmul.f32 %v1408, %v1413
        %v1419 = vmul.f32 %v1408, %v1417
        %v1420 = vadd.f32 %v1404, %v1418
        %v1421 = vadd.f32 %v1405, %v1419
        %1422 = vset.pattern.permute.xlu0 3
        %1423 = vperm.xlu0 %1422, %v1372
        %v1424 = vpop.permute.xlu0 %1423
        %v1426 = vlaneseq
        %v1427 = vshrl.u32 %v1426, 7
        %v1428 = vsub.s32 3, %v1427
        %v1429 = vrot.slane %v1369, %v1428
        %v1430 = vlaneseq
        %v1431 = vshrl.u32 %v1430, 7
        %v1432 = vsub.s32 3, %v1431
        %v1433 = vrot.slane %v1370, %v1432
        %v1434 = vmul.f32 %v1424, %v1429
        %v1435 = vmul.f32 %v1424, %v1433
        %v1436 = vadd.f32 %v1420, %v1434
        %v1437 = vadd.f32 %v1421, %v1435
        %v1438 = vmul.f32 %v1123, %v625
        %v1439 = vmul.f32 %v1124, %v629
        %s1440 = scalar_lea.vmem %s2, 16
        %v1441 = vld [vmem:[%s1440] sm:$0xf]
        %1443 = vset.pattern.permute.xlu0 0
        %1444 = vperm.xlu0 %1443, %v1441
        %v1445 = vpop.permute.xlu0 %1444
        %v1447 = vlaneseq
        %v1448 = vshrl.u32 %v1447, 7
        %v1449 = vsub.s32 0, %v1448
        %v1450 = vrot.slane %v1438, %v1449
        %v1451 = vlaneseq
        %v1452 = vshrl.u32 %v1451, 7
        %v1453 = vsub.s32 0, %v1452
        %v1454 = vrot.slane %v1439, %v1453
        %v1455 = vmul.f32 %v1445, %v1450
        %v1456 = vmul.f32 %v1445, %v1454
        %v1457 = vadd.f32 %v1436, %v1455
        %v1458 = vadd.f32 %v1437, %v1456
        %1459 = vset.pattern.permute.xlu0 1
        %1460 = vperm.xlu0 %1459, %v1441
        %v1461 = vpop.permute.xlu0 %1460
        %v1463 = vlaneseq
        %v1464 = vshrl.u32 %v1463, 7
        %v1465 = vsub.s32 1, %v1464
        %v1466 = vrot.slane %v1438, %v1465
        %v1467 = vlaneseq
        %v1468 = vshrl.u32 %v1467, 7
        %v1469 = vsub.s32 1, %v1468
        %v1470 = vrot.slane %v1439, %v1469
        %v1471 = vmul.f32 %v1461, %v1466
        %v1472 = vmul.f32 %v1461, %v1470
        %v1473 = vadd.f32 %v1457, %v1471
        %v1474 = vadd.f32 %v1458, %v1472
        %1475 = vset.pattern.permute.xlu0 2
        %1476 = vperm.xlu0 %1475, %v1441
        %v1477 = vpop.permute.xlu0 %1476
        %v1479 = vlaneseq
        %v1480 = vshrl.u32 %v1479, 7
        %v1481 = vsub.s32 2, %v1480
        %v1482 = vrot.slane %v1438, %v1481
        %v1483 = vlaneseq
        %v1484 = vshrl.u32 %v1483, 7
        %v1485 = vsub.s32 2, %v1484
        %v1486 = vrot.slane %v1439, %v1485
        %v1487 = vmul.f32 %v1477, %v1482
        %v1488 = vmul.f32 %v1477, %v1486
        %v1489 = vadd.f32 %v1473, %v1487
        %v1490 = vadd.f32 %v1474, %v1488
        %1491 = vset.pattern.permute.xlu0 3
        %1492 = vperm.xlu0 %1491, %v1441
        %v1493 = vpop.permute.xlu0 %1492
        %v1495 = vlaneseq
        %v1496 = vshrl.u32 %v1495, 7
        %v1497 = vsub.s32 3, %v1496
        %v1498 = vrot.slane %v1438, %v1497
        %v1499 = vlaneseq
        %v1500 = vshrl.u32 %v1499, 7
        %v1501 = vsub.s32 3, %v1500
        %v1502 = vrot.slane %v1439, %v1501
        %v1503 = vmul.f32 %v1493, %v1498
        %v1504 = vmul.f32 %v1493, %v1502
        %v1505 = vadd.f32 %v1489, %v1503
        %v1506 = vadd.f32 %v1490, %v1504
        %1507 = vrot.lane.b32.xlu0 %v1123, 127
        %v1508 = vpop.permute.xlu0 %1507
        %1509 = vrot.lane.b32.xlu0 %v1124, 127
        %v1510 = vpop.permute.xlu0 %1509
        %v1511 = vsel %vm747, %v1508, %v1510
        %v1515 = vsel %vm747, %v1510, %v1508
        %v1516 = vmul.f32 %v1511, %v759
        %v1517 = vmul.f32 %v1515, %v763
        %s1518 = scalar_lea.vmem %s2, 20
        %v1519 = vld [vmem:[%s1518] sm:$0xf]
        %1521 = vset.pattern.permute.xlu0 0
        %1522 = vperm.xlu0 %1521, %v1519
        %v1523 = vpop.permute.xlu0 %1522
        %v1525 = vlaneseq
        %v1526 = vshrl.u32 %v1525, 7
        %v1527 = vsub.s32 0, %v1526
        %v1528 = vrot.slane %v1516, %v1527
        %v1529 = vlaneseq
        %v1530 = vshrl.u32 %v1529, 7
        %v1531 = vsub.s32 0, %v1530
        %v1532 = vrot.slane %v1517, %v1531
        %v1533 = vmul.f32 %v1523, %v1528
        %v1534 = vmul.f32 %v1523, %v1532
        %v1535 = vadd.f32 %v1505, %v1533
        %v1536 = vadd.f32 %v1506, %v1534
        %1537 = vset.pattern.permute.xlu0 1
        %1538 = vperm.xlu0 %1537, %v1519
        %v1539 = vpop.permute.xlu0 %1538
        %v1541 = vlaneseq
        %v1542 = vshrl.u32 %v1541, 7
        %v1543 = vsub.s32 1, %v1542
        %v1544 = vrot.slane %v1516, %v1543
        %v1545 = vlaneseq
        %v1546 = vshrl.u32 %v1545, 7
        %v1547 = vsub.s32 1, %v1546
        %v1548 = vrot.slane %v1517, %v1547
        %v1549 = vmul.f32 %v1539, %v1544
        %v1550 = vmul.f32 %v1539, %v1548
        %v1551 = vadd.f32 %v1535, %v1549
        %v1552 = vadd.f32 %v1536, %v1550
        %1553 = vset.pattern.permute.xlu0 2
        %1554 = vperm.xlu0 %1553, %v1519
        %v1555 = vpop.permute.xlu0 %1554
        %v1557 = vlaneseq
        %v1558 = vshrl.u32 %v1557, 7
        %v1559 = vsub.s32 2, %v1558
        %v1560 = vrot.slane %v1516, %v1559
        %v1561 = vlaneseq
        %v1562 = vshrl.u32 %v1561, 7
        %v1563 = vsub.s32 2, %v1562
        %v1564 = vrot.slane %v1517, %v1563
        %v1565 = vmul.f32 %v1555, %v1560
        %v1566 = vmul.f32 %v1555, %v1564
        %v1567 = vadd.f32 %v1551, %v1565
        %v1568 = vadd.f32 %v1552, %v1566
        %1569 = vset.pattern.permute.xlu0 3
        %1570 = vperm.xlu0 %1569, %v1519
        %v1571 = vpop.permute.xlu0 %1570
        %v1573 = vlaneseq
        %v1574 = vshrl.u32 %v1573, 7
        %v1575 = vsub.s32 3, %v1574
        %v1576 = vrot.slane %v1516, %v1575
        %v1577 = vlaneseq
        %v1578 = vshrl.u32 %v1577, 7
        %v1579 = vsub.s32 3, %v1578
        %v1580 = vrot.slane %v1517, %v1579
        %v1581 = vmul.f32 %v1571, %v1576
        %v1582 = vmul.f32 %v1571, %v1580
        %v1583 = vadd.f32 %v1567, %v1581
        %v1584 = vadd.f32 %v1568, %v1582
        %1585 = vrot.lane.b32.xlu0 %v1123, 113
        %v1586 = vpop.permute.xlu0 %1585
        %1587 = vrot.lane.b32.xlu0 %v1124, 113
        %v1588 = vpop.permute.xlu0 %1587
        %v1589 = vsel %vm839, %v1586, %v1588
        %v1593 = vsel %vm839, %v1588, %v1586
        %v1594 = vmul.f32 %v1589, %v851
        %v1595 = vmul.f32 %v1593, %v855
        %s1596 = scalar_lea.vmem %s2, 24
        %v1597 = vld [vmem:[%s1596] sm:$0xf]
        %1599 = vset.pattern.permute.xlu0 0
        %1600 = vperm.xlu0 %1599, %v1597
        %v1601 = vpop.permute.xlu0 %1600
        %v1603 = vlaneseq
        %v1604 = vshrl.u32 %v1603, 7
        %v1605 = vsub.s32 0, %v1604
        %v1606 = vrot.slane %v1594, %v1605
        %v1607 = vlaneseq
        %v1608 = vshrl.u32 %v1607, 7
        %v1609 = vsub.s32 0, %v1608
        %v1610 = vrot.slane %v1595, %v1609
        %v1611 = vmul.f32 %v1601, %v1606
        %v1612 = vmul.f32 %v1601, %v1610
        %v1613 = vadd.f32 %v1583, %v1611
        %v1614 = vadd.f32 %v1584, %v1612
        %1615 = vset.pattern.permute.xlu0 1
        %1616 = vperm.xlu0 %1615, %v1597
        %v1617 = vpop.permute.xlu0 %1616
        %v1619 = vlaneseq
        %v1620 = vshrl.u32 %v1619, 7
        %v1621 = vsub.s32 1, %v1620
        %v1622 = vrot.slane %v1594, %v1621
        %v1623 = vlaneseq
        %v1624 = vshrl.u32 %v1623, 7
        %v1625 = vsub.s32 1, %v1624
        %v1626 = vrot.slane %v1595, %v1625
        %v1627 = vmul.f32 %v1617, %v1622
        %v1628 = vmul.f32 %v1617, %v1626
        %v1629 = vadd.f32 %v1613, %v1627
        %v1630 = vadd.f32 %v1614, %v1628
        %1631 = vset.pattern.permute.xlu0 2
        %1632 = vperm.xlu0 %1631, %v1597
        %v1633 = vpop.permute.xlu0 %1632
        %v1635 = vlaneseq
        %v1636 = vshrl.u32 %v1635, 7
        %v1637 = vsub.s32 2, %v1636
        %v1638 = vrot.slane %v1594, %v1637
        %v1639 = vlaneseq
        %v1640 = vshrl.u32 %v1639, 7
        %v1641 = vsub.s32 2, %v1640
        %v1642 = vrot.slane %v1595, %v1641
        %v1643 = vmul.f32 %v1633, %v1638
        %v1644 = vmul.f32 %v1633, %v1642
        %v1645 = vadd.f32 %v1629, %v1643
        %v1646 = vadd.f32 %v1630, %v1644
        %1647 = vset.pattern.permute.xlu0 3
        %1648 = vperm.xlu0 %1647, %v1597
        %v1649 = vpop.permute.xlu0 %1648
        %v1651 = vlaneseq
        %v1652 = vshrl.u32 %v1651, 7
        %v1653 = vsub.s32 3, %v1652
        %v1654 = vrot.slane %v1594, %v1653
        %v1655 = vlaneseq
        %v1656 = vshrl.u32 %v1655, 7
        %v1657 = vsub.s32 3, %v1656
        %v1658 = vrot.slane %v1595, %v1657
        %v1659 = vmul.f32 %v1649, %v1654
        %v1660 = vmul.f32 %v1649, %v1658
        %v1661 = vadd.f32 %v1645, %v1659
        %v1662 = vadd.f32 %v1646, %v1660
        %1663 = vrot.lane.b32.xlu0 %v1123, 112
        %v1664 = vpop.permute.xlu0 %1663
        %1665 = vrot.lane.b32.xlu0 %v1124, 112
        %v1666 = vpop.permute.xlu0 %1665
        %v1667 = vsel %vm931, %v1664, %v1666
        %v1671 = vsel %vm931, %v1666, %v1664
        %v1672 = vmul.f32 %v1667, %v943
        %v1673 = vmul.f32 %v1671, %v947
        %s1674 = scalar_lea.vmem %s2, 28
        %v1675 = vld [vmem:[%s1674] sm:$0xf]
        %1677 = vset.pattern.permute.xlu0 0
        %1678 = vperm.xlu0 %1677, %v1675
        %v1679 = vpop.permute.xlu0 %1678
        %v1681 = vlaneseq
        %v1682 = vshrl.u32 %v1681, 7
        %v1683 = vsub.s32 0, %v1682
        %v1684 = vrot.slane %v1672, %v1683
        %v1685 = vlaneseq
        %v1686 = vshrl.u32 %v1685, 7
        %v1687 = vsub.s32 0, %v1686
        %v1688 = vrot.slane %v1673, %v1687
        %v1689 = vmul.f32 %v1679, %v1684
        %v1690 = vmul.f32 %v1679, %v1688
        %v1691 = vadd.f32 %v1661, %v1689
        %v1692 = vadd.f32 %v1662, %v1690
        %1693 = vset.pattern.permute.xlu0 1
        %1694 = vperm.xlu0 %1693, %v1675
        %v1695 = vpop.permute.xlu0 %1694
        %v1697 = vlaneseq
        %v1698 = vshrl.u32 %v1697, 7
        %v1699 = vsub.s32 1, %v1698
        %v1700 = vrot.slane %v1672, %v1699
        %v1701 = vlaneseq
        %v1702 = vshrl.u32 %v1701, 7
        %v1703 = vsub.s32 1, %v1702
        %v1704 = vrot.slane %v1673, %v1703
        %v1705 = vmul.f32 %v1695, %v1700
        %v1706 = vmul.f32 %v1695, %v1704
        %v1707 = vadd.f32 %v1691, %v1705
        %v1708 = vadd.f32 %v1692, %v1706
        %1709 = vset.pattern.permute.xlu0 2
        %1710 = vperm.xlu0 %1709, %v1675
        %v1711 = vpop.permute.xlu0 %1710
        %v1713 = vlaneseq
        %v1714 = vshrl.u32 %v1713, 7
        %v1715 = vsub.s32 2, %v1714
        %v1716 = vrot.slane %v1672, %v1715
        %v1717 = vlaneseq
        %v1718 = vshrl.u32 %v1717, 7
        %v1719 = vsub.s32 2, %v1718
        %v1720 = vrot.slane %v1673, %v1719
        %v1721 = vmul.f32 %v1711, %v1716
        %v1722 = vmul.f32 %v1711, %v1720
        %v1723 = vadd.f32 %v1707, %v1721
        %v1724 = vadd.f32 %v1708, %v1722
        %1725 = vset.pattern.permute.xlu0 3
        %1726 = vperm.xlu0 %1725, %v1675
        %v1727 = vpop.permute.xlu0 %1726
        %v1729 = vlaneseq
        %v1730 = vshrl.u32 %v1729, 7
        %v1731 = vsub.s32 3, %v1730
        %v1732 = vrot.slane %v1672, %v1731
        %v1733 = vlaneseq
        %v1734 = vshrl.u32 %v1733, 7
        %v1735 = vsub.s32 3, %v1734
        %v1736 = vrot.slane %v1673, %v1735
        %v1737 = vmul.f32 %v1727, %v1732
        %v1738 = vmul.f32 %v1727, %v1736
        %v1739 = vadd.f32 %v1723, %v1737
        %v1740 = vadd.f32 %v1724, %v1738
        %1741 = vrot.lane.b32.xlu0 %v1123, 111
        %v1742 = vpop.permute.xlu0 %1741
        %1743 = vrot.lane.b32.xlu0 %v1124, 111
        %v1744 = vpop.permute.xlu0 %1743
        %v1745 = vsel %vm1023, %v1742, %v1744
        %v1749 = vsel %vm1023, %v1744, %v1742
        %v1750 = vmul.f32 %v1745, %v1035
        %v1751 = vmul.f32 %v1749, %v1039
        %s1752 = scalar_lea.vmem %s2, 32
        %v1753 = vld [vmem:[%s1752] sm:$0xf]
        %1755 = vset.pattern.permute.xlu0 0
        %1756 = vperm.xlu0 %1755, %v1753
        %v1757 = vpop.permute.xlu0 %1756
        %v1759 = vlaneseq
        %v1760 = vshrl.u32 %v1759, 7
        %v1761 = vsub.s32 0, %v1760
        %v1762 = vrot.slane %v1750, %v1761
        %v1763 = vlaneseq
        %v1764 = vshrl.u32 %v1763, 7
        %v1765 = vsub.s32 0, %v1764
        %v1766 = vrot.slane %v1751, %v1765
        %v1767 = vmul.f32 %v1757, %v1762
        %v1768 = vmul.f32 %v1757, %v1766
        %v1769 = vadd.f32 %v1739, %v1767
        %v1770 = vadd.f32 %v1740, %v1768
        %1771 = vset.pattern.permute.xlu0 1
        %1772 = vperm.xlu0 %1771, %v1753
        %v1773 = vpop.permute.xlu0 %1772
        %v1775 = vlaneseq
        %v1776 = vshrl.u32 %v1775, 7
        %v1777 = vsub.s32 1, %v1776
        %v1778 = vrot.slane %v1750, %v1777
        %v1779 = vlaneseq
        %v1780 = vshrl.u32 %v1779, 7
        %v1781 = vsub.s32 1, %v1780
        %v1782 = vrot.slane %v1751, %v1781
        %v1783 = vmul.f32 %v1773, %v1778
        %v1784 = vmul.f32 %v1773, %v1782
        %v1785 = vadd.f32 %v1769, %v1783
        %v1786 = vadd.f32 %v1770, %v1784
        %1787 = vset.pattern.permute.xlu0 2
        %1788 = vperm.xlu0 %1787, %v1753
        %v1789 = vpop.permute.xlu0 %1788
        %v1791 = vlaneseq
        %v1792 = vshrl.u32 %v1791, 7
        %v1793 = vsub.s32 2, %v1792
        %v1794 = vrot.slane %v1750, %v1793
        %v1795 = vlaneseq
        %v1796 = vshrl.u32 %v1795, 7
        %v1797 = vsub.s32 2, %v1796
        %v1798 = vrot.slane %v1751, %v1797
        %v1799 = vmul.f32 %v1789, %v1794
        %v1800 = vmul.f32 %v1789, %v1798
        %v1801 = vadd.f32 %v1785, %v1799
        %v1802 = vadd.f32 %v1786, %v1800
        %1803 = vset.pattern.permute.xlu0 3
        %1804 = vperm.xlu0 %1803, %v1753
        %v1805 = vpop.permute.xlu0 %1804
        %v1807 = vlaneseq
        %v1808 = vshrl.u32 %v1807, 7
        %v1809 = vsub.s32 3, %v1808
        %v1810 = vrot.slane %v1750, %v1809
        %v1811 = vlaneseq
        %v1812 = vshrl.u32 %v1811, 7
        %v1813 = vsub.s32 3, %v1812
        %v1814 = vrot.slane %v1751, %v1813
        %v1815 = vmul.f32 %v1805, %v1810
        %v1816 = vmul.f32 %v1805, %v1814
        %v1817 = vadd.f32 %v1801, %v1815
        %v1818 = vadd.f32 %v1802, %v1816
        %v1819 = vld [vmem:[%s4] sm:$0xf]
        %1821 = vset.pattern.permute.xlu0 0
        %1822 = vperm.xlu0 %1821, %v1819
        %v1823 = vpop.permute.xlu0 %1822
        %v1825 = vadd.f32 %v1817, %v1823
        %v1826 = vadd.f32 %v1818, %v1823
        %v1828 = vadd.f32 %v1825, %v250
        %v1829 = vadd.f32 %v1826, %v252
        %vm1830 = vcmp.ge.f32.partialorder %v1828, 0.0
        %vm1831 = vcmp.ge.f32.partialorder %v1829, 0.0
        %v1832 = vmul.f32 %v1828, 0.2
        %v1833 = vmul.f32 %v1829, 0.2
        %v1834 = vsel %vm1830, %v1828, %v1832
        %v1835 = vsel %vm1831, %v1829, %v1833
        %v1838 = vcombine.low %v1834, %v1835
        %1840 = vst [vmem:[%s244] sm:$0xff] %v1838
        %s1841 = sand.u32 %s159, 1
        %s1842 = scalar_lea.sflag [#allocation3], %s1841
        %s1843 = sand.u32 %s159, 1
        %s1844 = smul.addr %s1843, 8
        %s1845 = scalar_lea.vmem [#allocation2], %s1844
        // Predicated region
        $region45: #{tpu_custom_call.1} parent=43 // pred_check
          %p1846 = pneg %p169
        $region46: #{tpu_custom_call.1} parent=43 // pred_check_branch
          %1848 = sbr.rel (%p1846) target = $region48
        $region47: #{tpu_custom_call.1} parent=43 // pred_region
          %s1850 = ssub.s32 128, 128
          %1851 = vsyncadd %s1842, %s1850
          %s1852 = smul.addr %s20, 2
          %s1853 = smul.addr %s1852, 64
          %s1854 = scalar_lea.hbm %s6, %s1853
          %s1856 = sshll.u32 %s1845, 4
          %s1857 = int_to_ptr.vmem [resolvable:$true] %s1856
          %1859 = dma.vmem_to_hbm [thread:$0]  %s1857, 128, %s1854, %s1842
        $region48: #{tpu_custom_call.1} parent=43 // pred_fallthru
          _
      $region44: #{tpu_custom_call.1} parent=5 // pred_fallthru
        _
      %p1860 = scmp.le.s32.totalorder 2, %s15
      // Predicated region
      $region49: #{tpu_custom_call.1} parent=5 // pred_check
        %p1861 = pneg %p1860
      $region50: #{tpu_custom_call.1} parent=5 // pred_check_branch
        %1863 = sbr.rel (%p1861) target = $region52
      $region51: #{tpu_custom_call.1} parent=5 // pred_region
        %s1864 = ssub.s32 %s15, 2
        // Predicated region
        $region53: #{tpu_custom_call.1} parent=51 // pred_check
          %p1865 = pneg %p175
        $region54: #{tpu_custom_call.1} parent=51 // pred_check_branch
          %1867 = sbr.rel (%p1865) target = $region56
        $region55: #{tpu_custom_call.1} parent=51 // pred_region
          %s1868 = sand.u32 %s160, 1
          %s1869 = scalar_lea.sflag [#allocation3], %s1868
          %s1870 = sand.u32 %s160, 1
          %s1871 = smul.addr %s1870, 8
          %s1872 = scalar_lea.vmem [#allocation2], %s1871
          %1873 = dma.done %s1869, 128
        $region56: #{tpu_custom_call.1} parent=51 // pred_fallthru
          _
      $region52: #{tpu_custom_call.1} parent=5 // pred_fallthru
        _
    $region6: #{tpu_custom_call.1} parent=1 // loop_footer
      %s19 = sadd.s32 1, %s15
    $region7: #{tpu_custom_call.1} parent=1 // loop_footer_branch
      %14 = sbr.rel target = $region3
    $region8: #{tpu_custom_call.1} parent=1 // loop_exit
      _
    %1874 = vsyncpa [#allocation3], 1
    %s1875 = scalar_lea.sflag [#allocation3], 1
    %1876 = vsyncpa %s1875, 1

</llo_original>
